<compile_context>
chip_gen: v6e
topology: v6e:2x2x1
jax: 0.10.0
libtpu: 0.0.40
codegen_flags: <defaults>
</compile_context>

<pallas_src>
import math

import jax
import jax.numpy as jnp
from jax.experimental import pallas as pl
from jax.experimental.pallas import tpu as pltpu

_INV_SQRT2 = 0.7071067811865475


# ----------------------------------------------------------------------------
# Fused kernel:  fc1 -> depthwise 3x3 + residual + GELU -> fc2
# Grid = (B, H/tH).  Per step it sees one (tH, W) spatial strip plus the row
# above and below it (halo), computes everything in VMEM, writes (tH, W, Cout).
# ----------------------------------------------------------------------------
def _fused_mlp_kernel(xc_ref, xt_ref, xb_ref, w1_ref, b1_ref, wdw_ref,
                      bdw_ref, w2_ref, b2_ref, o_ref, h_scr):
    s = pl.program_id(1)
    n_strips = pl.num_programs(1)

    tH, W, Cin = xc_ref.shape[1], xc_ref.shape[2], xc_ref.shape[3]
    Chid = h_scr.shape[2]
    Cout = o_ref.shape[3]
    cdt = w1_ref.dtype                      # matmul operand dtype (bf16 default)

    w1 = w1_ref[...]                        # (Cin, Chid)
    b1 = b1_ref[...].astype(jnp.float32)    # (1, Chid)

    # ---- fc1 for the centre strip and the two halo rows (MXU, f32 accum) ----
    xc = xc_ref[...].astype(cdt).reshape(tH * W, Cin)
    hc = jnp.dot(xc, w1, preferred_element_type=jnp.float32) + b1    # (tH*W, Chid)

    xt = xt_ref[...].astype(cdt).reshape(W, Cin)
    ht = jnp.dot(xt, w1, preferred_element_type=jnp.float32) + b1    # (W, Chid)
    xb = xb_ref[...].astype(cdt).reshape(W, Cin)
    hb = jnp.dot(xb, w1, preferred_element_type=jnp.float32) + b1    # (W, Chid)

    # Zero the halo rows at the image border (Conv2d padding=1 semantics).
    ht = jnp.where(s > 0, ht, 0.0)
    hb = jnp.where(s < n_strips - 1, hb, 0.0)

    # ---- stage the haloed hidden strip into a zero-bordered VMEM scratch ----
    # h_scr rows: 0 = row above strip, 1..tH = strip, tH+1 = row below strip.
    # h_scr cols: 0 and W+1 are the zero padding along W.
    h_scr[:, 0:1, :] = jnp.zeros((tH + 2, 1, Chid), jnp.float32)
    h_scr[:, W + 1:W + 2, :] = jnp.zeros((tH + 2, 1, Chid), jnp.float32)
    h_scr[0:1, 1:W + 1, :] = ht.reshape(1, W, Chid)
    h_scr[tH + 1:tH + 2, 1:W + 1, :] = hb.reshape(1, W, Chid)
    h_scr[1:tH + 1, 1:W + 1, :] = hc.reshape(tH, W, Chid)

    # ---- depthwise 3x3 (cross-correlation) + bias + residual, exact GELU ----
    wdw = wdw_ref[...].astype(jnp.float32)                      # (9, Chid)
    bdw = bdw_ref[...].astype(jnp.float32).reshape(1, 1, Chid)  # conv bias

    centre = h_scr[1:tH + 1, 1:W + 1, :]                        # residual tap
    acc = centre + bdw
    for ky in range(3):
        for kx in range(3):
            k = ky * 3 + kx
            tap = h_scr[ky:ky + tH, kx:kx + W, :]               # offset read, no copy chain
            w_tap = wdw[k:k + 1, :].reshape(1, 1, Chid)
            acc = acc + tap * w_tap

    # exact GELU (nn.GELU default): 0.5 * y * (1 + erf(y / sqrt(2)))
    g = 0.5 * acc * (1.0 + jax.lax.erf(acc * _INV_SQRT2))

    # ---- fc2 (MXU, f32 accum), fused output cast ----
    w2 = w2_ref[...]                                            # (Chid, Cout)
    b2 = b2_ref[...].astype(jnp.float32)                        # (1, Cout)
    y = jnp.dot(g.reshape(tH * W, Chid).astype(w2_ref.dtype), w2,
                preferred_element_type=jnp.float32) + b2
    o_ref[...] = y.reshape(1, tH, W, Cout).astype(o_ref.dtype)


# ----------------------------------------------------------------------------
# Strip-height selection: largest divisor of H whose haloed f32 hidden strip
# (with ~3 live copies: scratch + acc + a tap/GELU temp) fits the VMEM budget.
# ----------------------------------------------------------------------------
def _pick_strip_rows(H, W, Chid, budget_bytes=8 * 1024 * 1024):
    per_row = (W + 2) * Chid * 4 * 3
    max_rows = max(1, budget_bytes // per_row - 2)
    best = 1
    for t in range(1, H + 1):
        if H % t == 0 and t <= max_rows:
            best = t
    return best


# ----------------------------------------------------------------------------
# Mlp forward.  matmul_dtype=jnp.bfloat16 (default) uses bf16 MXU operands
# with f32 accumulation; pass matmul_dtype=None for the exact f32 path.
# ----------------------------------------------------------------------------
def mlp_forward(x, params, H, W, *, matmul_dtype=jnp.bfloat16, strip_rows=None):
    B, N, Cin = x.shape
    assert N == H * W, "token count must equal H*W"
    w1, b1 = params["w1"], params["b1"]
    w2, b2 = params["w2"], params["b2"]
    wdw, bdw = params["w_dw"], params["b_dw"]
    Chid, Cout = w1.shape[1], w2.shape[1]
    out_dtype = x.dtype

    cdt = matmul_dtype if matmul_dtype is not None else w1.dtype
    w1c = w1.astype(cdt)    # cast once; reused every call/step
    w2c = w2.astype(cdt)

    tH = strip_rows if strip_rows is not None else _pick_strip_rows(H, W, Chid)
    assert H % tH == 0, "strip_rows must divide H"
    n_strips = H // tH

    x_img = x.reshape(B, H, W, Cin)

    # Explicit VMEM limit sized from double-buffered tiles + in-kernel temps.
    in_isz = x_img.dtype.itemsize
    out_isz = jnp.dtype(out_dtype).itemsize
    w_isz = jnp.dtype(cdt).itemsize
    hid_f32 = (tH + 2) * (W + 2) * Chid * 4
    est = (4 * hid_f32
           + 2 * (tH + 2) * W * Cin * in_isz
           + 2 * tH * W * Cout * out_isz
           + 2 * (Cin * Chid + Chid * Cout) * w_isz
           + (9 + 2) * Chid * 4 + Cout * 4)
    vmem_limit = int(min(max(2 * est, 32 * 1024 * 1024), 56 * 1024 * 1024))

    out = pl.pallas_call(
        _fused_mlp_kernel,
        out_shape=jax.ShapeDtypeStruct((B, H, W, Cout), out_dtype),
        grid=(B, n_strips),
        in_specs=[
            # centre strip of x
            pl.BlockSpec((1, tH, W, Cin), lambda b, s: (b, s, 0, 0)),
            # row above the strip (clamped at the border; masked in-kernel)
            pl.BlockSpec((1, 1, W, Cin),
                         lambda b, s: (b, jnp.maximum(s * tH - 1, 0), 0, 0)),
            # row below the strip (clamped at the border; masked in-kernel)
            pl.BlockSpec((1, 1, W, Cin),
                         lambda b, s: (b, jnp.minimum(s * tH + tH, H - 1), 0, 0)),
            pl.BlockSpec((Cin, Chid), lambda b, s: (0, 0)),   # w1
            pl.BlockSpec((1, Chid), lambda b, s: (0, 0)),     # b1
            pl.BlockSpec((9, Chid), lambda b, s: (0, 0)),     # depthwise weights
            pl.BlockSpec((1, Chid), lambda b, s: (0, 0)),     # depthwise bias
            pl.BlockSpec((Chid, Cout), lambda b, s: (0, 0)),  # w2
            pl.BlockSpec((1, Cout), lambda b, s: (0, 0)),     # b2
        ],
        out_specs=pl.BlockSpec((1, tH, W, Cout), lambda b, s: (b, s, 0, 0)),
        scratch_shapes=[pltpu.VMEM((tH + 2, W + 2, Chid), jnp.float32)],
        compiler_params=pltpu.CompilerParams(
            dimension_semantics=("parallel", "parallel"),
            vmem_limit_bytes=vmem_limit),
    )(x_img, x_img, x_img,
      w1c, b1.reshape(1, Chid), wdw, bdw.reshape(1, Chid),
      w2c, b2.reshape(1, Cout))

    return out.reshape(B, N, Cout)


# ----------------------------------------------------------------------------
# Pure-JAX f32 reference (mirrors the PyTorch forward) for validation.
# ----------------------------------------------------------------------------
def mlp_reference(x, params, H, W):
    B, N, _ = x.shape
    h = x @ params["w1"] + params["b1"]
    Chid = h.shape[-1]
    himg = h.reshape(B, H, W, Chid)
    hp = jnp.pad(himg, ((0, 0), (1, 1), (1, 1), (0, 0)))
    conv = jnp.zeros_like(himg)
    for ky in range(3):
        for kx in range(3):
            conv = conv + hp[:, ky:ky + H, kx:kx + W, :] * params["w_dw"][ky * 3 + kx]
    conv = conv + params["b_dw"]
    a = himg + conv
    g = 0.5 * a * (1.0 + jax.lax.erf(a * _INV_SQRT2))
    return g.reshape(B, N, Chid) @ params["w2"] + params["b2"]


# ----------------------------------------------------------------------------
# Parameter init (shapes match Mlp; small non-zero biases so the bias-add
# paths are actually exercised by the numerical check — PyTorch zeroes them).
# ----------------------------------------------------------------------------
def init_params(key, in_features, hidden_features, out_features):
    k1, k2, k3, k4 = jax.random.split(key, 4)
    w1 = 0.02 * jax.random.normal(k1, (in_features, hidden_features), jnp.float32)
    w2 = 0.02 * jax.random.normal(k2, (hidden_features, out_features), jnp.float32)
    # Depthwise Conv2d(hid, hid, 3, groups=hid): normal(0, sqrt(2/fan_out)),
    # fan_out = 9.  Stored as (9, Chid) = taps (ky*3+kx) x channels.
    w_dw = math.sqrt(2.0 / 9.0) * jax.random.normal(
        k3, (9, hidden_features), jnp.float32)
    kb1, kb2, kbd = jax.random.split(k4, 3)
    b1 = 0.02 * jax.random.normal(kb1, (hidden_features,), jnp.float32)
    b2 = 0.02 * jax.random.normal(kb2, (out_features,), jnp.float32)
    b_dw = 0.02 * jax.random.normal(kbd, (hidden_features,), jnp.float32)
    return {"w1": w1, "b1": b1, "w2": w2, "b2": b2, "w_dw": w_dw, "b_dw": b_dw}


if __name__ == "__main__":
    # small shapes: B=2, H=W=8 -> N=64 tokens, in=32, hidden=64, out=32
    B, H, W = 2, 8, 8
    N = H * W
    in_features, hidden_features, out_features = 32, 64, 32

    key = jax.random.PRNGKey(0)
    kx, kp = jax.random.split(key)
    x = jax.random.normal(kx, (B, N, in_features), jnp.float32)
    params = init_params(kp, in_features, hidden_features, out_features)

    y_ref = mlp_reference(x, params, H, W)

    # Default path (one strip per image) and a 2-strip path that exercises
    # the real neighbour-row halo across strip boundaries.
    y_full = mlp_forward(x, params, H, W)                    # bf16 MXU default
    y_strips = mlp_forward(x, params, H, W, strip_rows=4)    # H/tH = 2 strips
    jax.block_until_ready(y_strips)

    assert y_full.shape == (B, N, out_features)
    assert y_strips.shape == (B, N, out_features)
    assert bool(jnp.isfinite(y_full).all()) and bool(jnp.isfinite(y_strips).all())
    err_full = float(jnp.max(jnp.abs(y_full - y_ref)))
    err_strips = float(jnp.max(jnp.abs(y_strips - y_ref)))
    # bf16 matmul operands with f32 accumulation: generous tolerance.
    assert err_full < 2e-2, f"full-strip max abs err {err_full}"
    assert err_strips < 2e-2, f"2-strip max abs err {err_strips}"
    print("KERNEL_OK")
</pallas_src>

<mosaic_0001>
module attributes {stable_mosaic.version = 11 : i64} {
  func.func @_fused_mlp_kernel(%arg0: i32, %arg1: i32, %arg2: memref<1x8x8x32xf32, #tpu.memory_space<vmem>>, %arg3: memref<1x1x8x32xf32, #tpu.memory_space<vmem>>, %arg4: memref<1x1x8x32xf32, #tpu.memory_space<vmem>>, %arg5: memref<32x64xbf16, #tpu.memory_space<vmem>>, %arg6: memref<1x64xf32, #tpu.memory_space<vmem>>, %arg7: memref<9x64xf32, #tpu.memory_space<vmem>>, %arg8: memref<1x64xf32, #tpu.memory_space<vmem>>, %arg9: memref<64x32xbf16, #tpu.memory_space<vmem>>, %arg10: memref<1x32xf32, #tpu.memory_space<vmem>>, %arg11: memref<1x8x8x32xf32, #tpu.memory_space<vmem>>, %arg12: memref<10x10x64xf32, #tpu.memory_space<vmem>>) attributes {dimension_semantics = [#tpu.dimension_semantics<parallel>, #tpu.dimension_semantics<parallel>], iteration_bounds = array<i64: 2, 1>, scalar_prefetch = 0 : i64, scratch_operands = 1 : i64, tpu.core_type = #tpu.core_type<tc>, window_params = [{transform_indices = @transform_0, window_bounds = array<i64: 1, 8, 8, 32>}, {transform_indices = @transform_1, window_bounds = array<i64: 1, 1, 8, 32>}, {transform_indices = @transform_2, window_bounds = array<i64: 1, 1, 8, 32>}, {pipeline_mode = #tpu.pipeline_mode<synchronous>, transform_indices = @transform_3, window_bounds = array<i64: 32, 64>}, {pipeline_mode = #tpu.pipeline_mode<synchronous>, transform_indices = @transform_4, window_bounds = array<i64: 1, 64>}, {pipeline_mode = #tpu.pipeline_mode<synchronous>, transform_indices = @transform_5, window_bounds = array<i64: 9, 64>}, {pipeline_mode = #tpu.pipeline_mode<synchronous>, transform_indices = @transform_6, window_bounds = array<i64: 1, 64>}, {pipeline_mode = #tpu.pipeline_mode<synchronous>, transform_indices = @transform_7, window_bounds = array<i64: 64, 32>}, {pipeline_mode = #tpu.pipeline_mode<synchronous>, transform_indices = @transform_8, window_bounds = array<i64: 1, 32>}, {transform_indices = @transform_9, window_bounds = array<i64: 1, 8, 8, 32>}]} {
    %c0 = arith.constant 0 : index
    %c0_0 = arith.constant 0 : index
    %0 = vector.load %arg5[%c0, %c0_0] : memref<32x64xbf16, #tpu.memory_space<vmem>>, vector<32x64xbf16>
    %c0_1 = arith.constant 0 : index
    %c0_2 = arith.constant 0 : index
    %1 = vector.load %arg6[%c0_1, %c0_2] : memref<1x64xf32, #tpu.memory_space<vmem>>, vector<1x64xf32>
    %c0_3 = arith.constant 0 : index
    %c0_4 = arith.constant 0 : index
    %c0_5 = arith.constant 0 : index
    %c0_6 = arith.constant 0 : index
    %2 = vector.load %arg2[%c0_3, %c0_4, %c0_5, %c0_6] : memref<1x8x8x32xf32, #tpu.memory_space<vmem>>, vector<1x8x8x32xf32>
    %3 = arith.truncf %2 : vector<1x8x8x32xf32> to vector<1x8x8x32xbf16>
    %4 = vector.shape_cast %3 : vector<1x8x8x32xbf16> to vector<64x32xbf16>
    %cst = arith.constant dense<0.000000e+00> : vector<64x64xf32>
    %5 = tpu.matmul %4, %0, %cst {dimension_numbers = #tpu.dot_dimension_numbers<[1], [0], [0], [1], [0, 0, 1, 1], [], []>} : vector<64x32xbf16>, vector<32x64xbf16>, vector<64x64xf32> -> vector<64x64xf32>
    %6 = vector.broadcast %1 : vector<1x64xf32> to vector<64x64xf32>
    %7 = arith.addf %5, %6 : vector<64x64xf32>
    %c0_7 = arith.constant 0 : index
    %c0_8 = arith.constant 0 : index
    %c0_9 = arith.constant 0 : index
    %c0_10 = arith.constant 0 : index
    %8 = vector.load %arg3[%c0_7, %c0_8, %c0_9, %c0_10] : memref<1x1x8x32xf32, #tpu.memory_space<vmem>>, vector<1x1x8x32xf32>
    %9 = arith.truncf %8 : vector<1x1x8x32xf32> to vector<1x1x8x32xbf16>
    %10 = vector.shape_cast %9 : vector<1x1x8x32xbf16> to vector<8x32xbf16>
    %cst_11 = arith.constant dense<0.000000e+00> : vector<8x64xf32>
    %11 = tpu.matmul %10, %0, %cst_11 {dimension_numbers = #tpu.dot_dimension_numbers<[1], [0], [0], [1], [0, 0, 1, 1], [], []>} : vector<8x32xbf16>, vector<32x64xbf16>, vector<8x64xf32> -> vector<8x64xf32>
    %12 = vector.broadcast %1 : vector<1x64xf32> to vector<8x64xf32>
    %13 = arith.addf %11, %12 : vector<8x64xf32>
    %c0_12 = arith.constant 0 : index
    %c0_13 = arith.constant 0 : index
    %c0_14 = arith.constant 0 : index
    %c0_15 = arith.constant 0 : index
    %14 = vector.load %arg4[%c0_12, %c0_13, %c0_14, %c0_15] : memref<1x1x8x32xf32, #tpu.memory_space<vmem>>, vector<1x1x8x32xf32>
    %15 = arith.truncf %14 : vector<1x1x8x32xf32> to vector<1x1x8x32xbf16>
    %16 = vector.shape_cast %15 : vector<1x1x8x32xbf16> to vector<8x32xbf16>
    %cst_16 = arith.constant dense<0.000000e+00> : vector<8x64xf32>
    %17 = tpu.matmul %16, %0, %cst_16 {dimension_numbers = #tpu.dot_dimension_numbers<[1], [0], [0], [1], [0, 0, 1, 1], [], []>} : vector<8x32xbf16>, vector<32x64xbf16>, vector<8x64xf32> -> vector<8x64xf32>
    %18 = vector.broadcast %1 : vector<1x64xf32> to vector<8x64xf32>
    %19 = arith.addf %17, %18 : vector<8x64xf32>
    %c0_i32 = arith.constant 0 : i32
    %20 = arith.cmpi sgt, %arg1, %c0_i32 : i32
    %cst_17 = arith.constant 0.000000e+00 : f32
    %21 = vector.broadcast %cst_17 : f32 to vector<8x64xf32>
    %22 = arith.select %20, %13, %21 : vector<8x64xf32>
    %c0_i32_18 = arith.constant 0 : i32
    %23 = arith.cmpi slt, %arg1, %c0_i32_18 : i32
    %cst_19 = arith.constant 0.000000e+00 : f32
    %24 = vector.broadcast %cst_19 : f32 to vector<8x64xf32>
    %25 = arith.select %23, %19, %24 : vector<8x64xf32>
    %cst_20 = arith.constant 0.000000e+00 : f32
    %26 = vector.broadcast %cst_20 : f32 to vector<10x1x64xf32>
    %c0_21 = arith.constant 0 : index
    %c0_22 = arith.constant 0 : index
    %c0_23 = arith.constant 0 : index
    %27 = vector.load %arg12[%c0_21, %c0_22, %c0_23] : memref<10x10x64xf32, #tpu.memory_space<vmem>>, vector<10x1x64xf32>
    tpu.vector_store %arg12[%c0_21, %c0_22, %c0_23], %26 {strides = array<i32>} : memref<10x10x64xf32, #tpu.memory_space<vmem>>, vector<10x1x64xf32>,
    %cst_24 = arith.constant 0.000000e+00 : f32
    %28 = vector.broadcast %cst_24 : f32 to vector<10x1x64xf32>
    %c0_25 = arith.constant 0 : index
    %c9 = arith.constant 9 : index
    %c0_26 = arith.constant 0 : index
    %29 = vector.load %arg12[%c0_25, %c9, %c0_26] : memref<10x10x64xf32, #tpu.memory_space<vmem>>, vector<10x1x64xf32>
    tpu.vector_store %arg12[%c0_25, %c9, %c0_26], %28 {strides = array<i32>} : memref<10x10x64xf32, #tpu.memory_space<vmem>>, vector<10x1x64xf32>,
    %30 = vector.shape_cast %22 : vector<8x64xf32> to vector<1x8x64xf32>
    %c0_27 = arith.constant 0 : index
    %c1 = arith.constant 1 : index
    %c0_28 = arith.constant 0 : index
    %31 = vector.load %arg12[%c0_27, %c1, %c0_28] : memref<10x10x64xf32, #tpu.memory_space<vmem>>, vector<1x8x64xf32>
    tpu.vector_store %arg12[%c0_27, %c1, %c0_28], %30 {strides = array<i32>} : memref<10x10x64xf32, #tpu.memory_space<vmem>>, vector<1x8x64xf32>,
    %32 = vector.shape_cast %25 : vector<8x64xf32> to vector<1x8x64xf32>
    %c9_29 = arith.constant 9 : index
    %c1_30 = arith.constant 1 : index
    %c0_31 = arith.constant 0 : index
    %33 = vector.load %arg12[%c9_29, %c1_30, %c0_31] : memref<10x10x64xf32, #tpu.memory_space<vmem>>, vector<1x8x64xf32>
    tpu.vector_store %arg12[%c9_29, %c1_30, %c0_31], %32 {strides = array<i32>} : memref<10x10x64xf32, #tpu.memory_space<vmem>>, vector<1x8x64xf32>,
    %34 = vector.shape_cast %7 : vector<64x64xf32> to vector<8x8x64xf32>
    %c1_32 = arith.constant 1 : index
    %c1_33 = arith.constant 1 : index
    %c0_34 = arith.constant 0 : index
    %35 = vector.load %arg12[%c1_32, %c1_33, %c0_34] : memref<10x10x64xf32, #tpu.memory_space<vmem>>, vector<8x8x64xf32>
    tpu.vector_store %arg12[%c1_32, %c1_33, %c0_34], %34 {strides = array<i32>} : memref<10x10x64xf32, #tpu.memory_space<vmem>>, vector<8x8x64xf32>,
    %c0_35 = arith.constant 0 : index
    %c0_36 = arith.constant 0 : index
    %36 = vector.load %arg7[%c0_35, %c0_36] : memref<9x64xf32, #tpu.memory_space<vmem>>, vector<9x64xf32>
    %c0_37 = arith.constant 0 : index
    %c0_38 = arith.constant 0 : index
    %37 = vector.load %arg8[%c0_37, %c0_38] : memref<1x64xf32, #tpu.memory_space<vmem>>, vector<1x64xf32>
    %38 = vector.shape_cast %37 : vector<1x64xf32> to vector<1x1x64xf32>
    %c1_39 = arith.constant 1 : index
    %c1_40 = arith.constant 1 : index
    %c0_41 = arith.constant 0 : index
    %39 = vector.load %arg12[%c1_39, %c1_40, %c0_41] : memref<10x10x64xf32, #tpu.memory_space<vmem>>, vector<8x8x64xf32>
    %40 = vector.broadcast %38 : vector<1x1x64xf32> to vector<8x8x64xf32>
    %41 = arith.addf %39, %40 : vector<8x8x64xf32>
    %c0_42 = arith.constant 0 : index
    %c0_43 = arith.constant 0 : index
    %c0_44 = arith.constant 0 : index
    %42 = vector.load %arg12[%c0_42, %c0_43, %c0_44] : memref<10x10x64xf32, #tpu.memory_space<vmem>>, vector<8x8x64xf32>
    %43 = vector.extract_strided_slice %36 {offsets = [0, 0], sizes = [1, 64], strides = [1, 1]} : vector<9x64xf32> to vector<1x64xf32>
    %44 = vector.shape_cast %43 : vector<1x64xf32> to vector<1x1x64xf32>
    %45 = vector.broadcast %44 : vector<1x1x64xf32> to vector<8x8x64xf32>
    %46 = arith.mulf %42, %45 : vector<8x8x64xf32>
    %47 = arith.addf %41, %46 : vector<8x8x64xf32>
    %c0_45 = arith.constant 0 : index
    %c1_46 = arith.constant 1 : index
    %c0_47 = arith.constant 0 : index
    %48 = vector.load %arg12[%c0_45, %c1_46, %c0_47] : memref<10x10x64xf32, #tpu.memory_space<vmem>>, vector<8x8x64xf32>
    %49 = vector.extract_strided_slice %36 {offsets = [1, 0], sizes = [1, 64], strides = [1, 1]} : vector<9x64xf32> to vector<1x64xf32>
    %50 = vector.shape_cast %49 : vector<1x64xf32> to vector<1x1x64xf32>
    %51 = vector.broadcast %50 : vector<1x1x64xf32> to vector<8x8x64xf32>
    %52 = arith.mulf %48, %51 : vector<8x8x64xf32>
    %53 = arith.addf %47, %52 : vector<8x8x64xf32>
    %c0_48 = arith.constant 0 : index
    %c2 = arith.constant 2 : index
    %c0_49 = arith.constant 0 : index
    %54 = vector.load %arg12[%c0_48, %c2, %c0_49] : memref<10x10x64xf32, #tpu.memory_space<vmem>>, vector<8x8x64xf32>
    %55 = vector.extract_strided_slice %36 {offsets = [2, 0], sizes = [1, 64], strides = [1, 1]} : vector<9x64xf32> to vector<1x64xf32>
    %56 = vector.shape_cast %55 : vector<1x64xf32> to vector<1x1x64xf32>
    %57 = vector.broadcast %56 : vector<1x1x64xf32> to vector<8x8x64xf32>
    %58 = arith.mulf %54, %57 : vector<8x8x64xf32>
    %59 = arith.addf %53, %58 : vector<8x8x64xf32>
    %c1_50 = arith.constant 1 : index
    %c0_51 = arith.constant 0 : index
    %c0_52 = arith.constant 0 : index
    %60 = vector.load %arg12[%c1_50, %c0_51, %c0_52] : memref<10x10x64xf32, #tpu.memory_space<vmem>>, vector<8x8x64xf32>
    %61 = vector.extract_strided_slice %36 {offsets = [3, 0], sizes = [1, 64], strides = [1, 1]} : vector<9x64xf32> to vector<1x64xf32>
    %62 = vector.shape_cast %61 : vector<1x64xf32> to vector<1x1x64xf32>
    %63 = vector.broadcast %62 : vector<1x1x64xf32> to vector<8x8x64xf32>
    %64 = arith.mulf %60, %63 : vector<8x8x64xf32>
    %65 = arith.addf %59, %64 : vector<8x8x64xf32>
    %c1_53 = arith.constant 1 : index
    %c1_54 = arith.constant 1 : index
    %c0_55 = arith.constant 0 : index
    %66 = vector.load %arg12[%c1_53, %c1_54, %c0_55] : memref<10x10x64xf32, #tpu.memory_space<vmem>>, vector<8x8x64xf32>
    %67 = vector.extract_strided_slice %36 {offsets = [4, 0], sizes = [1, 64], strides = [1, 1]} : vector<9x64xf32> to vector<1x64xf32>
    %68 = vector.shape_cast %67 : vector<1x64xf32> to vector<1x1x64xf32>
    %69 = vector.broadcast %68 : vector<1x1x64xf32> to vector<8x8x64xf32>
    %70 = arith.mulf %66, %69 : vector<8x8x64xf32>
    %71 = arith.addf %65, %70 : vector<8x8x64xf32>
    %c1_56 = arith.constant 1 : index
    %c2_57 = arith.constant 2 : index
    %c0_58 = arith.constant 0 : index
    %72 = vector.load %arg12[%c1_56, %c2_57, %c0_58] : memref<10x10x64xf32, #tpu.memory_space<vmem>>, vector<8x8x64xf32>
    %73 = vector.extract_strided_slice %36 {offsets = [5, 0], sizes = [1, 64], strides = [1, 1]} : vector<9x64xf32> to vector<1x64xf32>
    %74 = vector.shape_cast %73 : vector<1x64xf32> to vector<1x1x64xf32>
    %75 = vector.broadcast %74 : vector<1x1x64xf32> to vector<8x8x64xf32>
    %76 = arith.mulf %72, %75 : vector<8x8x64xf32>
    %77 = arith.addf %71, %76 : vector<8x8x64xf32>
    %c2_59 = arith.constant 2 : index
    %c0_60 = arith.constant 0 : index
    %c0_61 = arith.constant 0 : index
    %78 = vector.load %arg12[%c2_59, %c0_60, %c0_61] : memref<10x10x64xf32, #tpu.memory_space<vmem>>, vector<8x8x64xf32>
    %79 = vector.extract_strided_slice %36 {offsets = [6, 0], sizes = [1, 64], strides = [1, 1]} : vector<9x64xf32> to vector<1x64xf32>
    %80 = vector.shape_cast %79 : vector<1x64xf32> to vector<1x1x64xf32>
    %81 = vector.broadcast %80 : vector<1x1x64xf32> to vector<8x8x64xf32>
    %82 = arith.mulf %78, %81 : vector<8x8x64xf32>
    %83 = arith.addf %77, %82 : vector<8x8x64xf32>
    %c2_62 = arith.constant 2 : index
    %c1_63 = arith.constant 1 : index
    %c0_64 = arith.constant 0 : index
    %84 = vector.load %arg12[%c2_62, %c1_63, %c0_64] : memref<10x10x64xf32, #tpu.memory_space<vmem>>, vector<8x8x64xf32>
    %85 = vector.extract_strided_slice %36 {offsets = [7, 0], sizes = [1, 64], strides = [1, 1]} : vector<9x64xf32> to vector<1x64xf32>
    %86 = vector.shape_cast %85 : vector<1x64xf32> to vector<1x1x64xf32>
    %87 = vector.broadcast %86 : vector<1x1x64xf32> to vector<8x8x64xf32>
    %88 = arith.mulf %84, %87 : vector<8x8x64xf32>
    %89 = arith.addf %83, %88 : vector<8x8x64xf32>
    %c2_65 = arith.constant 2 : index
    %c2_66 = arith.constant 2 : index
    %c0_67 = arith.constant 0 : index
    %90 = vector.load %arg12[%c2_65, %c2_66, %c0_67] : memref<10x10x64xf32, #tpu.memory_space<vmem>>, vector<8x8x64xf32>
    %91 = vector.extract_strided_slice %36 {offsets = [8, 0], sizes = [1, 64], strides = [1, 1]} : vector<9x64xf32> to vector<1x64xf32>
    %92 = vector.shape_cast %91 : vector<1x64xf32> to vector<1x1x64xf32>
    %93 = vector.broadcast %92 : vector<1x1x64xf32> to vector<8x8x64xf32>
    %94 = arith.mulf %90, %93 : vector<8x8x64xf32>
    %95 = arith.addf %89, %94 : vector<8x8x64xf32>
    %cst_68 = arith.constant 5.000000e-01 : f32
    %96 = vector.broadcast %cst_68 : f32 to vector<8x8x64xf32>
    %97 = arith.mulf %96, %95 : vector<8x8x64xf32>
    %cst_69 = arith.constant 0.707106769 : f32
    %98 = vector.broadcast %cst_69 : f32 to vector<8x8x64xf32>
    %99 = arith.mulf %95, %98 : vector<8x8x64xf32>
    %100 = math.erf %99 : vector<8x8x64xf32>
    %cst_70 = arith.constant 1.000000e+00 : f32
    %101 = vector.broadcast %cst_70 : f32 to vector<8x8x64xf32>
    %102 = arith.addf %101, %100 : vector<8x8x64xf32>
    %103 = arith.mulf %97, %102 : vector<8x8x64xf32>
    %c0_71 = arith.constant 0 : index
    %c0_72 = arith.constant 0 : index
    %104 = vector.load %arg9[%c0_71, %c0_72] : memref<64x32xbf16, #tpu.memory_space<vmem>>, vector<64x32xbf16>
    %c0_73 = arith.constant 0 : index
    %c0_74 = arith.constant 0 : index
    %105 = vector.load %arg10[%c0_73, %c0_74] : memref<1x32xf32, #tpu.memory_space<vmem>>, vector<1x32xf32>
    %106 = vector.shape_cast %103 : vector<8x8x64xf32> to vector<64x64xf32>
    %107 = arith.truncf %106 : vector<64x64xf32> to vector<64x64xbf16>
    %cst_75 = arith.constant dense<0.000000e+00> : vector<64x32xf32>
    %108 = tpu.matmul %107, %104, %cst_75 {dimension_numbers = #tpu.dot_dimension_numbers<[1], [0], [0], [1], [0, 0, 1, 1], [], []>} : vector<64x64xbf16>, vector<64x32xbf16>, vector<64x32xf32> -> vector<64x32xf32>
    %109 = vector.broadcast %105 : vector<1x32xf32> to vector<64x32xf32>
    %110 = arith.addf %108, %109 : vector<64x32xf32>
    %111 = vector.shape_cast %110 : vector<64x32xf32> to vector<1x8x8x32xf32>
    %c0_76 = arith.constant 0 : index
    %c0_77 = arith.constant 0 : index
    %c0_78 = arith.constant 0 : index
    %c0_79 = arith.constant 0 : index
    %112 = vector.load %arg11[%c0_76, %c0_77, %c0_78, %c0_79] : memref<1x8x8x32xf32, #tpu.memory_space<vmem>>, vector<1x8x8x32xf32>
    tpu.vector_store %arg11[%c0_76, %c0_77, %c0_78, %c0_79], %111 {strides = array<i32>} : memref<1x8x8x32xf32, #tpu.memory_space<vmem>>, vector<1x8x8x32xf32>,
    return
  }
  func.func @transform_0(%arg0: i32, %arg1: i32) -> (i32, i32, i32, i32) {
    %c0_i32 = arith.constant 0 : i32
    %c0_i32_0 = arith.constant 0 : i32
    %c0_i32_1 = arith.constant 0 : i32
    return %arg0, %arg1, %c0_i32, %c0_i32_0 : i32, i32, i32, i32
  }
  func.func @transform_1(%arg0: i32, %arg1: i32) -> (i32, i32, i32, i32) {
    %c8_i32 = arith.constant 8 : i32
    %0 = arith.muli %arg1, %c8_i32 : i32
    %c1_i32 = arith.constant 1 : i32
    %1 = arith.subi %0, %c1_i32 : i32
    %c0_i32 = arith.constant 0 : i32
    %2 = arith.maxsi %1, %c0_i32 : i32
    %c0_i32_0 = arith.constant 0 : i32
    %c0_i32_1 = arith.constant 0 : i32
    %c0_i32_2 = arith.constant 0 : i32
    return %arg0, %2, %c0_i32_0, %c0_i32_1 : i32, i32, i32, i32
  }
  func.func @transform_2(%arg0: i32, %arg1: i32) -> (i32, i32, i32, i32) {
    %c8_i32 = arith.constant 8 : i32
    %0 = arith.muli %arg1, %c8_i32 : i32
    %c8_i32_0 = arith.constant 8 : i32
    %1 = arith.addi %0, %c8_i32_0 : i32
    %c7_i32 = arith.constant 7 : i32
    %2 = arith.minsi %1, %c7_i32 : i32
    %c0_i32 = arith.constant 0 : i32
    %c0_i32_1 = arith.constant 0 : i32
    %c0_i32_2 = arith.constant 0 : i32
    return %arg0, %2, %c0_i32, %c0_i32_1 : i32, i32, i32, i32
  }
  func.func @transform_3(%arg0: i32, %arg1: i32) -> (i32, i32) {
    %c0_i32 = arith.constant 0 : i32
    %c0_i32_0 = arith.constant 0 : i32
    %c0_i32_1 = arith.constant 0 : i32
    return %c0_i32, %c0_i32_0 : i32, i32
  }
  func.func @transform_4(%arg0: i32, %arg1: i32) -> (i32, i32) {
    %c0_i32 = arith.constant 0 : i32
    %c0_i32_0 = arith.constant 0 : i32
    %c0_i32_1 = arith.constant 0 : i32
    return %c0_i32, %c0_i32_0 : i32, i32
  }
  func.func @transform_5(%arg0: i32, %arg1: i32) -> (i32, i32) {
    %c0_i32 = arith.constant 0 : i32
    %c0_i32_0 = arith.constant 0 : i32
    %c0_i32_1 = arith.constant 0 : i32
    return %c0_i32, %c0_i32_0 : i32, i32
  }
  func.func @transform_6(%arg0: i32, %arg1: i32) -> (i32, i32) {
    %c0_i32 = arith.constant 0 : i32
    %c0_i32_0 = arith.constant 0 : i32
    %c0_i32_1 = arith.constant 0 : i32
    return %c0_i32, %c0_i32_0 : i32, i32
  }
  func.func @transform_7(%arg0: i32, %arg1: i32) -> (i32, i32) {
    %c0_i32 = arith.constant 0 : i32
    %c0_i32_0 = arith.constant 0 : i32
    %c0_i32_1 = arith.constant 0 : i32
    return %c0_i32, %c0_i32_0 : i32, i32
  }
  func.func @transform_8(%arg0: i32, %arg1: i32) -> (i32, i32) {
    %c0_i32 = arith.constant 0 : i32
    %c0_i32_0 = arith.constant 0 : i32
    %c0_i32_1 = arith.constant 0 : i32
    return %c0_i32, %c0_i32_0 : i32, i32
  }
  func.func @transform_9(%arg0: i32, %arg1: i32) -> (i32, i32, i32, i32) {
    %c0_i32 = arith.constant 0 : i32
    %c0_i32_0 = arith.constant 0 : i32
    %c0_i32_1 = arith.constant 0 : i32
    return %arg0, %arg1, %c0_i32, %c0_i32_0 : i32, i32, i32, i32
  }
}

</mosaic_0001>

<llo_original>
// kernel: tpu_custom_call.1
$region0: #{tpu_custom_call.1}
  #allocation0 [shape = 'u32[]', space=smem, size = 0x4, offset = 0x4, fixed_abs, tag = 'smem constant byte address 0x4 - core index']
  #allocation1 [shape = 'u32[144,128]{1,0:T(1,128)}', space=vmem, size = 0x12000, scoped, tag = 'internal scratch']
  #allocation2 [shape = 'f32[10,10,64]{2,1,0:T(8,128)}', space=vmem, size = 0x14000, scoped, tag = 'scratch operand']
  %s0 = inlined_call_operand.hbm [shape: f32[2,8,8,32], index: 0, kind: input, shape index: {}]
  %s1 = inlined_call_operand.hbm [shape: f32[2,8,8,32], index: 1, kind: input, shape index: {}]
  %s2 = inlined_call_operand.hbm [shape: f32[2,8,8,32], index: 2, kind: input, shape index: {}]
  %s3 = inlined_call_operand.vmem [shape: bf16[32,64], index: 3, kind: input, shape index: {}]
  %s4 = inlined_call_operand.vmem [shape: f32[1,64], index: 4, kind: input, shape index: {}]
  %s5 = inlined_call_operand.vmem [shape: f32[9,64], index: 5, kind: input, shape index: {}]
  %s6 = inlined_call_operand.vmem [shape: f32[1,64], index: 6, kind: input, shape index: {}]
  %s7 = inlined_call_operand.vmem [shape: bf16[64,32], index: 7, kind: input, shape index: {}]
  %s8 = inlined_call_operand.vmem [shape: f32[1,32], index: 8, kind: input, shape index: {}]
  %s9 = inlined_call_operand.hbm [shape: f32[2,8,8,32], index: 9, kind: output, shape index: {}]
  %s10 = sld [smem:[#allocation0]]
  $region81: #{tpu_custom_call.1} parent=0
    _
  %s12 = ssub.s32 1, %s10
  %s13 = scalar_select 0, %s12, %s10
  $region1: #{tpu_custom_call.1} parent=0
    #allocation3 [shape = 'u8[65536]{0}', space=vmem, size = 0x10000, scoped, tag = 'input window, operand 0']
    #allocation4 [shape = 's32[2]{0}', space=sflag, size = 0x8, scoped, tag = 'scoped memory for tpu_custom_call.1']
    #allocation5 [shape = 's32[2]{0}', space=sflag, size = 0x8, scoped, tag = 'scoped memory for tpu_custom_call.1']
    #allocation6 [shape = 'u8[8192]{0}', space=vmem, size = 0x2000, scoped, tag = 'input window, operand 1']
    #allocation7 [shape = 's32[2]{0}', space=sflag, size = 0x8, scoped, tag = 'scoped memory for tpu_custom_call.1']
    #allocation8 [shape = 'u8[8192]{0}', space=vmem, size = 0x2000, scoped, tag = 'input window, operand 2']
    #allocation9 [shape = 'u8[65536]{0}', space=vmem, size = 0x10000, scoped, tag = 'output window, operand 0']
    %14 = vsyncpa [#allocation4], 0
    %s15 = scalar_lea.sflag [#allocation4], 1
    %16 = vsyncpa %s15, 0
    %17 = vsyncpa [#allocation7], 0
    %s18 = scalar_lea.sflag [#allocation7], 1
    %19 = vsyncpa %s18, 0
    %20 = vsyncpa [#allocation5], 0
    %s21 = scalar_lea.sflag [#allocation5], 1
    %22 = vsyncpa %s21, 0
    loop: start=0, step=1, limit=4
    $region2: #{tpu_custom_call.1} parent=1 // loop_pre_header
      _
    $region3: #{tpu_custom_call.1} parent=1 // loop_header
      %s24 = sphi 0, %s28
      %p25 = scmp.ge.s32.totalorder %s24, 4
      %s31 = sphi 0, %s43
      %s32 = sphi 0, %s39
      %s33 = sphi 0, %s31
      %s34 = sphi 0, %s32
      %s35 = sphi 0, %s33
      %s36 = sphi 0, %s34
      %s48 = sphi 0, %s50
      %s51 = sphi 0, %s48
      %s52 = sphi 0, %s51
      %s68 = sphi 0, %s52
      %s84 = sphi 0, %s86
      %s87 = sphi 0, %s84
      %s88 = sphi 0, %s87
      %s104 = sphi 0, %s88
      %s120 = sphi 0, %s122
      %s123 = sphi 0, %s120
      %s124 = sphi 0, %s123
      %s140 = sphi 0, %s124
      %s144 = sphi 0, %s144
      %s146 = sphi 0, %s144
      %s147 = sphi 0, %s146
      %s161 = sphi 0, %s147
      %s165 = sphi 0, %s165
      %s167 = sphi 0, %s165
      %s168 = sphi 0, %s167
      %s182 = sphi 0, %s168
      %s186 = sphi 0, %s186
      %s188 = sphi 0, %s186
      %s189 = sphi 0, %s188
      %s203 = sphi 0, %s189
      %s207 = sphi 0, %s207
      %s209 = sphi 0, %s207
      %s210 = sphi 0, %s209
      %s224 = sphi 0, %s210
      %s228 = sphi 0, %s228
      %s230 = sphi 0, %s228
      %s231 = sphi 0, %s230
      %s245 = sphi 0, %s231
      %s249 = sphi 0, %s249
      %s251 = sphi 0, %s249
      %s252 = sphi 0, %s251
      %s266 = sphi 0, %s252
      %s274 = sphi 0, %s276
      %s277 = sphi 0, %s274
      %s278 = sphi 0, %s277
      %s294 = sphi 0, %s278
    $region4: #{tpu_custom_call.1} parent=1 // loop_header_branch
      %27 = sbr.rel (%p25) target = $region8
    $region5: #{tpu_custom_call.1} parent=1 // loop_body
      %s29 = ssub.s32 %s24, 1
      %s30 = ssub.s32 %s24, 2
      %s37 = sadd.s32 1, %s32
      %p38 = scmp.ge.s32.totalorder %s37, 1
      %s39 = scalar_select %p38, 0, %s37
      %s40 = sadd.s32 1, %s31
      %s41 = scalar_select %p38, %s40, %s31
      %p42 = scmp.ge.s32.totalorder %s41, 2
      %s43 = scalar_select %p42, 0, %s41
      %s44 = ssub.s32 %s31, %s43
      %s45 = ssub.s32 %s32, %s39
      %s46 = sor.u32 %s44, %s45
      %p47 = scmp.eq.s32.totalorder %s46, 0
      %s49 = sadd.s32 %s48, 1
      %s50 = scalar_select %p47, %s48, %s49
      %p53 = pneg %p47
      %p54 = scmp.eq.s32.totalorder %s24, 1
      %p55 = por %p53, %p54
      %p56 = scmp.ne.s32.totalorder %s48, %s51
      %p57 = scmp.eq.s32.totalorder %s24, 0
      %p58 = por %p56, %p57
      %p59 = scmp.ne.s32.totalorder %s48, %s51
      %p60 = scmp.eq.s32.totalorder %s29, 1
      %p61 = por %p59, %p60
      %p62 = scmp.ne.s32.totalorder %s51, %s52
      %p63 = scmp.eq.s32.totalorder %s29, 0
      %p64 = por %p62, %p63
      %p65 = scmp.ne.s32.totalorder %s51, %s52
      %p66 = scmp.eq.s32.totalorder %s30, 1
      %p67 = por %p65, %p66
      %p69 = scmp.ne.s32.totalorder %s52, %s68
      %p70 = scmp.eq.s32.totalorder %s30, 0
      %p71 = por %p69, %p70
      %s72 = smul.u32 %s32, 8
      %s73 = ssub.s32 %s72, 1
      %p74 = scmp.gt.s32.totalorder %s73, 0
      %s75 = scalar_select %p74, %s73, 0
      %s76 = smul.u32 %s39, 8
      %s77 = ssub.s32 %s76, 1
      %p78 = scmp.gt.s32.totalorder %s77, 0
      %s79 = scalar_select %p78, %s77, 0
      %s80 = ssub.s32 %s31, %s43
      %s81 = ssub.s32 %s75, %s79
      %s82 = sor.u32 %s80, %s81
      %p83 = scmp.eq.s32.totalorder %s82, 0
      %s85 = sadd.s32 %s84, 1
      %s86 = scalar_select %p83, %s84, %s85
      %p89 = pneg %p83
      %p90 = scmp.eq.s32.totalorder %s24, 1
      %p91 = por %p89, %p90
      %p92 = scmp.ne.s32.totalorder %s84, %s87
      %p93 = scmp.eq.s32.totalorder %s24, 0
      %p94 = por %p92, %p93
      %p95 = scmp.ne.s32.totalorder %s84, %s87
      %p96 = scmp.eq.s32.totalorder %s29, 1
      %p97 = por %p95, %p96
      %p98 = scmp.ne.s32.totalorder %s87, %s88
      %p99 = scmp.eq.s32.totalorder %s29, 0
      %p100 = por %p98, %p99
      %p101 = scmp.ne.s32.totalorder %s87, %s88
      %p102 = scmp.eq.s32.totalorder %s30, 1
      %p103 = por %p101, %p102
      %p105 = scmp.ne.s32.totalorder %s88, %s104
      %p106 = scmp.eq.s32.totalorder %s30, 0
      %p107 = por %p105, %p106
      %s108 = smul.u32 %s32, 8
      %s109 = sadd.s32 %s108, 8
      %p110 = scmp.lt.s32.totalorder %s109, 7
      %s111 = scalar_select %p110, %s109, 7
      %s112 = smul.u32 %s39, 8
      %s113 = sadd.s32 %s112, 8
      %p114 = scmp.lt.s32.totalorder %s113, 7
      %s115 = scalar_select %p114, %s113, 7
      %s116 = ssub.s32 %s31, %s43
      %s117 = ssub.s32 %s111, %s115
      %s118 = sor.u32 %s116, %s117
      %p119 = scmp.eq.s32.totalorder %s118, 0
      %s121 = sadd.s32 %s120, 1
      %s122 = scalar_select %p119, %s120, %s121
      %p125 = pneg %p119
      %p126 = scmp.eq.s32.totalorder %s24, 1
      %p127 = por %p125, %p126
      %p128 = scmp.ne.s32.totalorder %s120, %s123
      %p129 = scmp.eq.s32.totalorder %s24, 0
      %p130 = por %p128, %p129
      %p131 = scmp.ne.s32.totalorder %s120, %s123
      %p132 = scmp.eq.s32.totalorder %s29, 1
      %p133 = por %p131, %p132
      %p134 = scmp.ne.s32.totalorder %s123, %s124
      %p135 = scmp.eq.s32.totalorder %s29, 0
      %p136 = por %p134, %p135
      %p137 = scmp.ne.s32.totalorder %s123, %s124
      %p138 = scmp.eq.s32.totalorder %s30, 1
      %p139 = por %p137, %p138
      %p141 = scmp.ne.s32.totalorder %s124, %s140
      %p142 = scmp.eq.s32.totalorder %s30, 0
      %p143 = por %p141, %p142
      %s145 = sadd.s32 %s144, 1
      %p148 = scmp.eq.s32.totalorder %s24, 1
      %p149 = scmp.ne.s32.totalorder %s144, %s146
      %p150 = scmp.eq.s32.totalorder %s24, 0
      %p151 = por %p149, %p150
      %p152 = scmp.ne.s32.totalorder %s144, %s146
      %p153 = scmp.eq.s32.totalorder %s29, 1
      %p154 = por %p152, %p153
      %p155 = scmp.ne.s32.totalorder %s146, %s147
      %p156 = scmp.eq.s32.totalorder %s29, 0
      %p157 = por %p155, %p156
      %p158 = scmp.ne.s32.totalorder %s146, %s147
      %p159 = scmp.eq.s32.totalorder %s30, 1
      %p160 = por %p158, %p159
      %p162 = scmp.ne.s32.totalorder %s147, %s161
      %p163 = scmp.eq.s32.totalorder %s30, 0
      %p164 = por %p162, %p163
      %s166 = sadd.s32 %s165, 1
      %p169 = scmp.eq.s32.totalorder %s24, 1
      %p170 = scmp.ne.s32.totalorder %s165, %s167
      %p171 = scmp.eq.s32.totalorder %s24, 0
      %p172 = por %p170, %p171
      %p173 = scmp.ne.s32.totalorder %s165, %s167
      %p174 = scmp.eq.s32.totalorder %s29, 1
      %p175 = por %p173, %p174
      %p176 = scmp.ne.s32.totalorder %s167, %s168
      %p177 = scmp.eq.s32.totalorder %s29, 0
      %p178 = por %p176, %p177
      %p179 = scmp.ne.s32.totalorder %s167, %s168
      %p180 = scmp.eq.s32.totalorder %s30, 1
      %p181 = por %p179, %p180
      %p183 = scmp.ne.s32.totalorder %s168, %s182
      %p184 = scmp.eq.s32.totalorder %s30, 0
      %p185 = por %p183, %p184
      %s187 = sadd.s32 %s186, 1
      %p190 = scmp.eq.s32.totalorder %s24, 1
      %p191 = scmp.ne.s32.totalorder %s186, %s188
      %p192 = scmp.eq.s32.totalorder %s24, 0
      %p193 = por %p191, %p192
      %p194 = scmp.ne.s32.totalorder %s186, %s188
      %p195 = scmp.eq.s32.totalorder %s29, 1
      %p196 = por %p194, %p195
      %p197 = scmp.ne.s32.totalorder %s188, %s189
      %p198 = scmp.eq.s32.totalorder %s29, 0
      %p199 = por %p197, %p198
      %p200 = scmp.ne.s32.totalorder %s188, %s189
      %p201 = scmp.eq.s32.totalorder %s30, 1
      %p202 = por %p200, %p201
      %p204 = scmp.ne.s32.totalorder %s189, %s203
      %p205 = scmp.eq.s32.totalorder %s30, 0
      %p206 = por %p204, %p205
      %s208 = sadd.s32 %s207, 1
      %p211 = scmp.eq.s32.totalorder %s24, 1
      %p212 = scmp.ne.s32.totalorder %s207, %s209
      %p213 = scmp.eq.s32.totalorder %s24, 0
      %p214 = por %p212, %p213
      %p215 = scmp.ne.s32.totalorder %s207, %s209
      %p216 = scmp.eq.s32.totalorder %s29, 1
      %p217 = por %p215, %p216
      %p218 = scmp.ne.s32.totalorder %s209, %s210
      %p219 = scmp.eq.s32.totalorder %s29, 0
      %p220 = por %p218, %p219
      %p221 = scmp.ne.s32.totalorder %s209, %s210
      %p222 = scmp.eq.s32.totalorder %s30, 1
      %p223 = por %p221, %p222
      %p225 = scmp.ne.s32.totalorder %s210, %s224
      %p226 = scmp.eq.s32.totalorder %s30, 0
      %p227 = por %p225, %p226
      %s229 = sadd.s32 %s228, 1
      %p232 = scmp.eq.s32.totalorder %s24, 1
      %p233 = scmp.ne.s32.totalorder %s228, %s230
      %p234 = scmp.eq.s32.totalorder %s24, 0
      %p235 = por %p233, %p234
      %p236 = scmp.ne.s32.totalorder %s228, %s230
      %p237 = scmp.eq.s32.totalorder %s29, 1
      %p238 = por %p236, %p237
      %p239 = scmp.ne.s32.totalorder %s230, %s231
      %p240 = scmp.eq.s32.totalorder %s29, 0
      %p241 = por %p239, %p240
      %p242 = scmp.ne.s32.totalorder %s230, %s231
      %p243 = scmp.eq.s32.totalorder %s30, 1
      %p244 = por %p242, %p243
      %p246 = scmp.ne.s32.totalorder %s231, %s245
      %p247 = scmp.eq.s32.totalorder %s30, 0
      %p248 = por %p246, %p247
      %s250 = sadd.s32 %s249, 1
      %p253 = scmp.eq.s32.totalorder %s24, 1
      %p254 = scmp.ne.s32.totalorder %s249, %s251
      %p255 = scmp.eq.s32.totalorder %s24, 0
      %p256 = por %p254, %p255
      %p257 = scmp.ne.s32.totalorder %s249, %s251
      %p258 = scmp.eq.s32.totalorder %s29, 1
      %p259 = por %p257, %p258
      %p260 = scmp.ne.s32.totalorder %s251, %s252
      %p261 = scmp.eq.s32.totalorder %s29, 0
      %p262 = por %p260, %p261
      %p263 = scmp.ne.s32.totalorder %s251, %s252
      %p264 = scmp.eq.s32.totalorder %s30, 1
      %p265 = por %p263, %p264
      %p267 = scmp.ne.s32.totalorder %s252, %s266
      %p268 = scmp.eq.s32.totalorder %s30, 0
      %p269 = por %p267, %p268
      %s270 = ssub.s32 %s31, %s43
      %s271 = ssub.s32 %s32, %s39
      %s272 = sor.u32 %s270, %s271
      %p273 = scmp.eq.s32.totalorder %s272, 0
      %s275 = sadd.s32 %s274, 1
      %s276 = scalar_select %p273, %s274, %s275
      %p279 = pneg %p273
      %p280 = scmp.eq.s32.totalorder %s24, 1
      %p281 = por %p279, %p280
      %p282 = scmp.ne.s32.totalorder %s274, %s277
      %p283 = scmp.eq.s32.totalorder %s24, 0
      %p284 = por %p282, %p283
      %p285 = scmp.ne.s32.totalorder %s274, %s277
      %p286 = scmp.eq.s32.totalorder %s29, 1
      %p287 = por %p285, %p286
      %p288 = scmp.ne.s32.totalorder %s277, %s278
      %p289 = scmp.eq.s32.totalorder %s29, 0
      %p290 = por %p288, %p289
      %p291 = scmp.ne.s32.totalorder %s277, %s278
      %p292 = scmp.eq.s32.totalorder %s30, 1
      %p293 = por %p291, %p292
      %p295 = scmp.ne.s32.totalorder %s278, %s294
      %p296 = scmp.eq.s32.totalorder %s30, 0
      %p297 = por %p295, %p296
      %p298 = scmp.le.s32.totalorder 1, %s24
      %p299 = scmp.lt.s32.totalorder %s24, 3
      %p300 = pnand %p298, %p299
      %p301 = pneg %p300
      // Predicated region
      $region9: #{tpu_custom_call.1} parent=5 // pred_check
        _
      $region10: #{tpu_custom_call.1} parent=5 // pred_check_branch
        %303 = sbr.rel (%p300) target = $region12
      $region11: #{tpu_custom_call.1} parent=5 // pred_region
        %s304 = ssub.s32 %s24, 1
        // Predicated region
        $region13: #{tpu_custom_call.1} parent=11 // pred_check
          %p305 = pneg %p157
        $region14: #{tpu_custom_call.1} parent=11 // pred_check_branch
          %307 = sbr.rel (%p305) target = $region16
        $region15: #{tpu_custom_call.1} parent=11 // pred_region
          _
        $region16: #{tpu_custom_call.1} parent=11 // pred_fallthru
          _
        // Predicated region
        $region17: #{tpu_custom_call.1} parent=11 // pred_check
          %p308 = pneg %p178
        $region18: #{tpu_custom_call.1} parent=11 // pred_check_branch
          %310 = sbr.rel (%p308) target = $region20
        $region19: #{tpu_custom_call.1} parent=11 // pred_region
          _
        $region20: #{tpu_custom_call.1} parent=11 // pred_fallthru
          _
        // Predicated region
        $region21: #{tpu_custom_call.1} parent=11 // pred_check
          %p311 = pneg %p199
        $region22: #{tpu_custom_call.1} parent=11 // pred_check_branch
          %313 = sbr.rel (%p311) target = $region24
        $region23: #{tpu_custom_call.1} parent=11 // pred_region
          _
        $region24: #{tpu_custom_call.1} parent=11 // pred_fallthru
          _
        // Predicated region
        $region25: #{tpu_custom_call.1} parent=11 // pred_check
          %p314 = pneg %p220
        $region26: #{tpu_custom_call.1} parent=11 // pred_check_branch
          %316 = sbr.rel (%p314) target = $region28
        $region27: #{tpu_custom_call.1} parent=11 // pred_region
          _
        $region28: #{tpu_custom_call.1} parent=11 // pred_fallthru
          _
        // Predicated region
        $region29: #{tpu_custom_call.1} parent=11 // pred_check
          %p317 = pneg %p241
        $region30: #{tpu_custom_call.1} parent=11 // pred_check_branch
          %319 = sbr.rel (%p317) target = $region32
        $region31: #{tpu_custom_call.1} parent=11 // pred_region
          _
        $region32: #{tpu_custom_call.1} parent=11 // pred_fallthru
          _
        // Predicated region
        $region33: #{tpu_custom_call.1} parent=11 // pred_check
          %p320 = pneg %p262
        $region34: #{tpu_custom_call.1} parent=11 // pred_check_branch
          %322 = sbr.rel (%p320) target = $region36
        $region35: #{tpu_custom_call.1} parent=11 // pred_region
          _
        $region36: #{tpu_custom_call.1} parent=11 // pred_fallthru
          _
      $region12: #{tpu_custom_call.1} parent=5 // pred_fallthru
        _
      %p323 = scmp.lt.s32.totalorder %s24, 2
      // Predicated region
      $region37: #{tpu_custom_call.1} parent=5 // pred_check
        %p324 = pneg %p323
      $region38: #{tpu_custom_call.1} parent=5 // pred_check_branch
        %326 = sbr.rel (%p324) target = $region40
      $region39: #{tpu_custom_call.1} parent=5 // pred_region
        // Predicated region
        $region41: #{tpu_custom_call.1} parent=39 // pred_check
          %p327 = pneg %p58
        $region42: #{tpu_custom_call.1} parent=39 // pred_check_branch
          %329 = sbr.rel (%p327) target = $region44
        $region43: #{tpu_custom_call.1} parent=39 // pred_region
          %s330 = sand.u32 %s48, 1
          %s331 = scalar_lea.sflag [#allocation4], %s330
          %s332 = sand.u32 %s48, 1
          %s333 = smul.addr %s332, 64
          %s334 = scalar_lea.vmem [#allocation3], %s333
          %s335 = smul.u32 8, %s32
          %s337 = ssub.s32 1024, 1024
          %338 = vsyncadd %s331, %s337
          %s339 = smul.addr %s31, 8
          %s340 = sadd.s32 %s335, %s339
          %s341 = smul.addr %s340, 128
          %s342 = scalar_lea.hbm %s0, %s341
          %s343 = sshll.u32 %s334, 4
          %s344 = int_to_ptr.vmem [resolvable:$true] %s343
          %349 = dma.hbm_to_vmem [thread:$0]  %s342, 1024, %s344, %s331, 128, 128, 8
        $region44: #{tpu_custom_call.1} parent=39 // pred_fallthru
          _
        // Predicated region
        $region45: #{tpu_custom_call.1} parent=39 // pred_check
          %p350 = pneg %p94
        $region46: #{tpu_custom_call.1} parent=39 // pred_check_branch
          %352 = sbr.rel (%p350) target = $region48
        $region47: #{tpu_custom_call.1} parent=39 // pred_region
          %s353 = sand.u32 %s24, 1
          %s354 = scalar_lea.sflag [#allocation7], %s353
          %s355 = sand.u32 %s84, 1
          %s356 = smul.addr %s355, 8
          %s357 = scalar_lea.vmem [#allocation6], %s356
          %s358 = smul.u32 %s32, 8
          %s359 = ssub.s32 %s358, 1
          %p360 = scmp.gt.s32.totalorder %s359, 0
          %s361 = scalar_select %p360, %s359, 0
          %s363 = ssub.s32 128, 128
          %364 = vsyncadd %s354, %s363
          %s365 = smul.addr %s31, 8
          %s366 = sadd.s32 %s361, %s365
          %s367 = smul.addr %s366, 128
          %s368 = scalar_lea.hbm %s1, %s367
          %s370 = sshll.u32 %s357, 4
          %s371 = int_to_ptr.vmem [resolvable:$true] %s370
          %373 = dma.hbm_to_vmem [thread:$0]  %s368, 128, %s371, %s354
        $region48: #{tpu_custom_call.1} parent=39 // pred_fallthru
          _
        // Predicated region
        $region49: #{tpu_custom_call.1} parent=39 // pred_check
          %p374 = pneg %p130
        $region50: #{tpu_custom_call.1} parent=39 // pred_check_branch
          %376 = sbr.rel (%p374) target = $region52
        $region51: #{tpu_custom_call.1} parent=39 // pred_region
          %s377 = sand.u32 %s24, 1
          %s378 = scalar_lea.sflag [#allocation7], %s377
          %s379 = sand.u32 %s120, 1
          %s380 = smul.addr %s379, 8
          %s381 = scalar_lea.vmem [#allocation8], %s380
          %s382 = smul.u32 %s32, 8
          %s383 = sadd.s32 %s382, 8
          %p384 = scmp.lt.s32.totalorder %s383, 7
          %s385 = scalar_select %p384, %s383, 7
          %s387 = ssub.s32 128, 128
          %388 = vsyncadd %s378, %s387
          %s389 = smul.addr %s31, 8
          %s390 = sadd.s32 %s385, %s389
          %s391 = smul.addr %s390, 128
          %s392 = scalar_lea.hbm %s2, %s391
          %s394 = sshll.u32 %s381, 4
          %s395 = int_to_ptr.vmem [resolvable:$true] %s394
          %397 = dma.hbm_to_vmem [thread:$0]  %s392, 128, %s395, %s378
        $region52: #{tpu_custom_call.1} parent=39 // pred_fallthru
          _
      $region40: #{tpu_custom_call.1} parent=5 // pred_fallthru
        _
      %p398 = scmp.le.s32.totalorder 1, %s24
      %p399 = scmp.lt.s32.totalorder %s24, 3
      %p400 = pnand %p398, %p399
      %p401 = pneg %p400
      // Predicated region
      $region53: #{tpu_custom_call.1} parent=5 // pred_check
        _
      $region54: #{tpu_custom_call.1} parent=5 // pred_check_branch
        %403 = sbr.rel (%p400) target = $region56
      $region55: #{tpu_custom_call.1} parent=5 // pred_region
        %s404 = ssub.s32 %s24, 1
        %s405 = sand.u32 %s51, 1
        %s406 = scalar_lea.sflag [#allocation4], %s405
        %s407 = sand.u32 %s51, 1
        %s408 = smul.addr %s407, 64
        %s409 = scalar_lea.vmem [#allocation3], %s408
        // Predicated region
        $region57: #{tpu_custom_call.1} parent=55 // pred_check
          %p410 = pneg %p64
        $region58: #{tpu_custom_call.1} parent=55 // pred_check_branch
          %412 = sbr.rel (%p410) target = $region60
        $region59: #{tpu_custom_call.1} parent=55 // pred_region
          %413 = dma.done %s406, 1024
        $region60: #{tpu_custom_call.1} parent=55 // pred_fallthru
          _
        %s414 = sand.u32 %s29, 1
        %s415 = scalar_lea.sflag [#allocation7], %s414
        %s416 = sand.u32 %s87, 1
        %s417 = smul.addr %s416, 8
        %s418 = scalar_lea.vmem [#allocation6], %s417
        // Predicated region
        $region61: #{tpu_custom_call.1} parent=55 // pred_check
          %p419 = pneg %p100
        $region62: #{tpu_custom_call.1} parent=55 // pred_check_branch
          %421 = sbr.rel (%p419) target = $region64
        $region63: #{tpu_custom_call.1} parent=55 // pred_region
          %422 = dma.done %s415, 128
        $region64: #{tpu_custom_call.1} parent=55 // pred_fallthru
          _
        %s423 = sand.u32 %s29, 1
        %s424 = scalar_lea.sflag [#allocation7], %s423
        %s425 = sand.u32 %s123, 1
        %s426 = smul.addr %s425, 8
        %s427 = scalar_lea.vmem [#allocation8], %s426
        // Predicated region
        $region65: #{tpu_custom_call.1} parent=55 // pred_check
          %p428 = pneg %p136
        $region66: #{tpu_custom_call.1} parent=55 // pred_check_branch
          %430 = sbr.rel (%p428) target = $region68
        $region67: #{tpu_custom_call.1} parent=55 // pred_region
          %431 = dma.done %s424, 128
        $region68: #{tpu_custom_call.1} parent=55 // pred_fallthru
          _
        %s432 = sand.u32 %s51, 1
        %s433 = scalar_lea.sflag [#allocation4], %s432
        %s434 = sand.u32 %s51, 1
        %s435 = smul.addr %s434, 64
        %s436 = scalar_lea.vmem [#allocation3], %s435
        %p437 = pneg %p64
        %p438 = pneg %p61
        %s439 = sand.u32 %s29, 1
        %s440 = scalar_lea.sflag [#allocation7], %s439
        %s441 = sand.u32 %s87, 1
        %s442 = smul.addr %s441, 8
        %s443 = scalar_lea.vmem [#allocation6], %s442
        %p444 = pneg %p100
        %p445 = pneg %p97
        %s446 = sand.u32 %s29, 1
        %s447 = scalar_lea.sflag [#allocation7], %s446
        %s448 = sand.u32 %s123, 1
        %s449 = smul.addr %s448, 8
        %s450 = scalar_lea.vmem [#allocation8], %s449
        %p451 = pneg %p136
        %p452 = pneg %p133
        %p453 = pneg %p157
        %p454 = pneg %p154
        %p455 = pneg %p178
        %p456 = pneg %p175
        %p457 = pneg %p199
        %p458 = pneg %p196
        %p459 = pneg %p220
        %p460 = pneg %p217
        %p461 = pneg %p241
        %p462 = pneg %p238
        %p463 = pneg %p262
        %p464 = pneg %p259
        %p465 = pneg %p290
        %p466 = pneg %p287
        %s467 = sand.u32 %s277, 1
        %s468 = scalar_lea.sflag [#allocation5], %s467
        %s469 = sand.u32 %s277, 1
        %s470 = smul.addr %s469, 64
        %s471 = scalar_lea.vmem [#allocation9], %s470
        %s472 = smul.u32 8, %s34
        %s473 = smul.u32 %s34, 8
        %s474 = ssub.s32 %s473, 1
        %p475 = scmp.gt.s32.totalorder %s474, 0
        %s476 = scalar_select %p475, %s474, 0
        %s477 = smul.u32 %s34, 8
        %s478 = sadd.s32 %s477, 8
        %p479 = scmp.lt.s32.totalorder %s478, 7
        %s480 = scalar_select %p479, %s478, 7
        %s481 = smul.u32 8, %s34
        %v483 = vld [vmem:[%s3] sm:$0xf]
        %v484 = vld [vmem:[%s3 + $0x4] sm:$0xf]
        %v485 = vld [vmem:[%s3 + $0x8] sm:$0xf]
        %v486 = vld [vmem:[%s3 + $0xc] sm:$0xf]
        %v487 = vld [vmem:[%s4] sm:$0x1]
        %v488 = vld [vmem:[%s409] sm:$0xff]
        %v489 = vld [vmem:[%s409 + $0x8] sm:$0xff]
        %v490 = vld [vmem:[%s409 + $0x10] sm:$0xff]
        %v491 = vld [vmem:[%s409 + $0x18] sm:$0xff]
        %v492 = vld [vmem:[%s409 + $0x20] sm:$0xff]
        %v493 = vld [vmem:[%s409 + $0x28] sm:$0xff]
        %v494 = vld [vmem:[%s409 + $0x30] sm:$0xff]
        %v495 = vld [vmem:[%s409 + $0x38] sm:$0xff]
        %v496 = vpack.c.bf16 %v488, %v488
        %v497 = vpack.c.bf16 %v489, %v489
        %v498 = vpack.c.bf16 %v490, %v490
        %v499 = vpack.c.bf16 %v491, %v491
        %v500 = vpack.c.bf16 %v492, %v492
        %v501 = vpack.c.bf16 %v493, %v493
        %v502 = vpack.c.bf16 %v494, %v494
        %v503 = vpack.c.bf16 %v495, %v495
        %v505 = vlaneseq
        %v506 = vshrl.u32 %v505, 7
        %v507 = vsub.s32 0, %v506
        %v508 = vrot.slane %v487, %v507
        %v518 = vunpack.c.l.b16 %v496
        %v519 = vunpack.c.l.b16 %v497
        %v520 = vunpack.c.l.b16 %v498
        %v521 = vunpack.c.l.b16 %v499
        %v522 = vunpack.c.l.b16 %v500
        %v523 = vunpack.c.l.b16 %v501
        %v524 = vunpack.c.l.b16 %v502
        %v525 = vunpack.c.l.b16 %v503
        %v526 = vpack.c.b16 %v519, %v518
        %v527 = vpack.c.b16 %v521, %v520
        %v528 = vpack.c.b16 %v523, %v522
        %v529 = vpack.c.b16 %v525, %v524
        %v534 = vunpack.c.l.b16 %v483
        %v535 = vunpack.c.l.b16 %v484
        %v536 = vunpack.c.l.b16 %v485
        %v537 = vunpack.c.l.b16 %v486
        %v538 = vpack.c.b16 %v535, %v534
        %v539 = vpack.c.b16 %v537, %v536
        %vm542 = vcmask 261120
        %v544 = vsel %vm542, %v526, 0
        %v547 = vsel %vm542, %v527, 0
        %v550 = vsel %vm542, %v528, 0
        %v553 = vsel %vm542, %v529, 0
        %555 = vmatprep.subr.bf16.mxu0 0
        %556 = vmatpush1.bf16.msra.mxu0 0
        %557 = vmatprep.subr.bf16.mxu0 0
        %558 = vmatpush1.bf16.msra.mxu0 0
        %559 = vmatprep.subr.bf16.mxu0 0
        %560 = vmatpush1.bf16.msra.mxu0 0
        %561 = vmatprep.subr.bf16.mxu0 0
        %562 = vmatpush1.bf16.msra.mxu0 0
        %563 = vmatprep.subr.bf16.mxu0 0
        %564 = vmatpush1.bf16.msra.mxu0 0
        %565 = vmatprep.subr.bf16.mxu0 0
        %566 = vmatpush1.bf16.msra.mxu0 0
        %567 = vmatprep.subr.bf16.mxu0 0
        %568 = vmatpush1.bf16.msra.mxu0 %v539
        %569 = vmatprep.subr.bf16.mxu0 0
        %570 = vmatpush1.bf16.msra.mxu0 %v538
        %571 = vmatprep.subr.bf16.mxu0 0
        %572 = vmatpush2.bf16.msra.mxu0 0
        %573 = vmatprep.subr.bf16.mxu0 0
        %574 = vmatpush2.bf16.msra.mxu0 0
        %575 = vmatprep.subr.bf16.mxu0 0
        %576 = vmatpush2.bf16.msra.mxu0 0
        %577 = vmatprep.subr.bf16.mxu0 0
        %578 = vmatpush2.bf16.msra.mxu0 0
        %579 = vmatprep.subr.bf16.mxu0 0
        %580 = vmatpush2.bf16.msra.mxu0 0
        %581 = vmatprep.subr.bf16.mxu0 0
        %582 = vmatpush2.bf16.msra.mxu0 0
        %583 = vmatprep.subr.bf16.mxu0 0
        %584 = vmatpush2.bf16.msra.mxu0 0
        %585 = vmatprep.subr.bf16.mxu0 0
        %586 = vmatpush2.bf16.msra.mxu0 0
        %587 = vmatprep.mubr.bf16.mxu0 0
        %588 = vmatmul.mubr.bf16.gmra.mxu0 %v544
        %v589 = vpop.f32.mrf.mxu0
        %v590 = vadd.f32 %v508, %v589
        %v591 = vpop.f32.mrf.mxu0
        %v592 = vpop.f32.mrf.mxu0
        %v593 = vadd.f32 %v508, %v592
        %v594 = vpop.f32.mrf.mxu0
        %595 = vmatprep.mubr.bf16.mxu0 0
        %596 = vmatmul.mubr.bf16.gmra.mxu0 %v547
        %v597 = vpop.f32.mrf.mxu0
        %v598 = vadd.f32 %v508, %v597
        %v599 = vpop.f32.mrf.mxu0
        %v600 = vpop.f32.mrf.mxu0
        %v601 = vadd.f32 %v508, %v600
        %v602 = vpop.f32.mrf.mxu0
        %603 = vmatprep.mubr.bf16.mxu0 0
        %604 = vmatmul.mubr.bf16.gmra.mxu0 %v550
        %v605 = vpop.f32.mrf.mxu0
        %v606 = vadd.f32 %v508, %v605
        %v607 = vpop.f32.mrf.mxu0
        %v608 = vpop.f32.mrf.mxu0
        %v609 = vadd.f32 %v508, %v608
        %v610 = vpop.f32.mrf.mxu0
        %611 = vmatprep.mubr.bf16.mxu0 0
        %612 = vmatmul.mubr.bf16.gmra.mxu0 %v553
        %v613 = vpop.f32.mrf.mxu0
        %v614 = vadd.f32 %v508, %v613
        %v615 = vpop.f32.mrf.mxu0
        %v616 = vpop.f32.mrf.mxu0
        %v617 = vadd.f32 %v508, %v616
        %v618 = vpop.f32.mrf.mxu0
        %619 = vdwg.mxu0
        %v620 = vld [vmem:[%s418] sm:$0xff]
        %v621 = vpack.c.bf16 %v620, %v620
        %v623 = vsel %vm542, %v621, 0
        %625 = vmatprep.subr.bf16.mxu0 0
        %626 = vmatpush1.bf16.msra.mxu0 0
        %627 = vmatprep.subr.bf16.mxu0 0
        %628 = vmatpush1.bf16.msra.mxu0 0
        %629 = vmatprep.subr.bf16.mxu0 0
        %630 = vmatpush1.bf16.msra.mxu0 0
        %631 = vmatprep.subr.bf16.mxu0 0
        %632 = vmatpush1.bf16.msra.mxu0 0
        %633 = vmatprep.subr.bf16.mxu0 0
        %634 = vmatpush1.bf16.msra.mxu0 0
        %635 = vmatprep.subr.bf16.mxu0 0
        %636 = vmatpush1.bf16.msra.mxu0 0
        %637 = vmatprep.subr.bf16.mxu0 0
        %638 = vmatpush1.bf16.msra.mxu0 %v539
        %639 = vmatprep.subr.bf16.mxu0 0
        %640 = vmatpush1.bf16.msra.mxu0 %v538
        %641 = vmatprep.subr.bf16.mxu0 0
        %642 = vmatpush2.bf16.msra.mxu0 0
        %643 = vmatprep.subr.bf16.mxu0 0
        %644 = vmatpush2.bf16.msra.mxu0 0
        %645 = vmatprep.subr.bf16.mxu0 0
        %646 = vmatpush2.bf16.msra.mxu0 0
        %647 = vmatprep.subr.bf16.mxu0 0
        %648 = vmatpush2.bf16.msra.mxu0 0
        %649 = vmatprep.subr.bf16.mxu0 0
        %650 = vmatpush2.bf16.msra.mxu0 0
        %651 = vmatprep.subr.bf16.mxu0 0
        %652 = vmatpush2.bf16.msra.mxu0 0
        %653 = vmatprep.subr.bf16.mxu0 0
        %654 = vmatpush2.bf16.msra.mxu0 0
        %655 = vmatprep.subr.bf16.mxu0 0
        %656 = vmatpush2.bf16.msra.mxu0 0
        %657 = vmatprep.mubr.bf16.mxu0 0
        %658 = vmatmul.mubr.bf16.gmra.mxu0 %v623
        %v659 = vpop.f32.mrf.mxu0
        %v660 = vadd.f32 %v508, %v659
        %v661 = vpop.f32.mrf.mxu0
        %v662 = vpop.f32.mrf.mxu0
        %v663 = vpop.f32.mrf.mxu0
        %664 = vdwg.mxu0
        %v665 = vld [vmem:[%s427] sm:$0xff]
        %v666 = vpack.c.bf16 %v665, %v665
        %v668 = vsel %vm542, %v666, 0
        %670 = vmatprep.subr.bf16.mxu0 0
        %671 = vmatpush1.bf16.msra.mxu0 0
        %672 = vmatprep.subr.bf16.mxu0 0
        %673 = vmatpush1.bf16.msra.mxu0 0
        %674 = vmatprep.subr.bf16.mxu0 0
        %675 = vmatpush1.bf16.msra.mxu0 0
        %676 = vmatprep.subr.bf16.mxu0 0
        %677 = vmatpush1.bf16.msra.mxu0 0
        %678 = vmatprep.subr.bf16.mxu0 0
        %679 = vmatpush1.bf16.msra.mxu0 0
        %680 = vmatprep.subr.bf16.mxu0 0
        %681 = vmatpush1.bf16.msra.mxu0 0
        %682 = vmatprep.subr.bf16.mxu0 0
        %683 = vmatpush1.bf16.msra.mxu0 %v539
        %684 = vmatprep.subr.bf16.mxu0 0
        %685 = vmatpush1.bf16.msra.mxu0 %v538
        %686 = vmatprep.subr.bf16.mxu0 0
        %687 = vmatpush2.bf16.msra.mxu0 0
        %688 = vmatprep.subr.bf16.mxu0 0
        %689 = vmatpush2.bf16.msra.mxu0 0
        %690 = vmatprep.subr.bf16.mxu0 0
        %691 = vmatpush2.bf16.msra.mxu0 0
        %692 = vmatprep.subr.bf16.mxu0 0
        %693 = vmatpush2.bf16.msra.mxu0 0
        %694 = vmatprep.subr.bf16.mxu0 0
        %695 = vmatpush2.bf16.msra.mxu0 0
        %696 = vmatprep.subr.bf16.mxu0 0
        %697 = vmatpush2.bf16.msra.mxu0 0
        %698 = vmatprep.subr.bf16.mxu0 0
        %699 = vmatpush2.bf16.msra.mxu0 0
        %700 = vmatprep.subr.bf16.mxu0 0
        %701 = vmatpush2.bf16.msra.mxu0 0
        %702 = vmatprep.mubr.bf16.mxu0 0
        %703 = vmatmul.mubr.bf16.gmra.mxu0 %v668
        %v704 = vpop.f32.mrf.mxu0
        %v705 = vadd.f32 %v508, %v704
        %v706 = vpop.f32.mrf.mxu0
        %v707 = vpop.f32.mrf.mxu0
        %v708 = vpop.f32.mrf.mxu0
        %709 = vdwg.mxu0
        %p710 = scmp.gt.s32.totalorder %s34, 0
        %s711 = scalar_select %p710, 1, 0
        %v712 = vstv %s711
        %vm713 = vcmp.eq.s32.totalorder %v712, 1
        %v714 = vsel %vm713, %v660, 0.0
        %p715 = scmp.lt.s32.totalorder %s34, 0
        %s716 = scalar_select %p715, 1, 0
        %v717 = vstv %s716
        %vm718 = vcmp.eq.s32.totalorder %v717, 1
        %v719 = vsel %vm718, %v705, 0.0
        %vm720 = vcmask 516096
        %721 = vst.msk [vmem:[#allocation2] sm:$0x1] %vm720, 0.0
        %722 = vst.msk [vmem:[#allocation2 + $0x10] sm:$0x1] %vm720, 0.0
        %723 = vst.msk [vmem:[#allocation2 + $0x20] sm:$0x1] %vm720, 0.0
        %724 = vst.msk [vmem:[#allocation2 + $0x30] sm:$0x1] %vm720, 0.0
        %725 = vst.msk [vmem:[#allocation2 + $0x40] sm:$0x1] %vm720, 0.0
        %726 = vst.msk [vmem:[#allocation2 + $0x50] sm:$0x1] %vm720, 0.0
        %727 = vst.msk [vmem:[#allocation2 + $0x60] sm:$0x1] %vm720, 0.0
        %728 = vst.msk [vmem:[#allocation2 + $0x70] sm:$0x1] %vm720, 0.0
        %729 = vst.msk [vmem:[#allocation2 + $0x80] sm:$0x1] %vm720, 0.0
        %730 = vst.msk [vmem:[#allocation2 + $0x90] sm:$0x1] %vm720, 0.0
        %731 = vst.msk [vmem:[#allocation2 + $0x9] sm:$0x1] %vm720, 0.0
        %732 = vst.msk [vmem:[#allocation2 + $0x19] sm:$0x1] %vm720, 0.0
        %733 = vst.msk [vmem:[#allocation2 + $0x29] sm:$0x1] %vm720, 0.0
        %734 = vst.msk [vmem:[#allocation2 + $0x39] sm:$0x1] %vm720, 0.0
        %735 = vst.msk [vmem:[#allocation2 + $0x49] sm:$0x1] %vm720, 0.0
        %736 = vst.msk [vmem:[#allocation2 + $0x59] sm:$0x1] %vm720, 0.0
        %737 = vst.msk [vmem:[#allocation2 + $0x69] sm:$0x1] %vm720, 0.0
        %738 = vst.msk [vmem:[#allocation2 + $0x79] sm:$0x1] %vm720, 0.0
        %739 = vst.msk [vmem:[#allocation2 + $0x89] sm:$0x1] %vm720, 0.0
        %740 = vst.msk [vmem:[#allocation2 + $0x99] sm:$0x1] %vm720, 0.0
        %vm741 = vcmask 523264
        %742 = vst.msk [vmem:[#allocation2 + $0x1] sm:$0xff] %vm741, %v714
        %s743 = scalar_lea.vmem [#allocation2], 144
        %744 = vst.msk [vmem:[%s743 + $0x1] sm:$0xff] %vm741, %v719
        %s745 = scalar_lea.vmem [#allocation2], 16
        %746 = vst.msk [vmem:[%s745 + $0x1] sm:$0xff] %vm741, %v590
        %747 = vst.msk [vmem:[%s745 + $0x11] sm:$0xff] %vm741, %v593
        %748 = vst.msk [vmem:[%s745 + $0x21] sm:$0xff] %vm741, %v598
        %749 = vst.msk [vmem:[%s745 + $0x31] sm:$0xff] %vm741, %v601
        %750 = vst.msk [vmem:[%s745 + $0x41] sm:$0xff] %vm741, %v606
        %751 = vst.msk [vmem:[%s745 + $0x51] sm:$0xff] %vm741, %v609
        %752 = vst.msk [vmem:[%s745 + $0x61] sm:$0xff] %vm741, %v614
        %753 = vst.msk [vmem:[%s745 + $0x71] sm:$0xff] %vm741, %v617
        %v754 = vld [vmem:[%s5] sm:$0xff]
        %v755 = vld [vmem:[%s5 + $0x8] sm:$0x1]
        %v756 = vld [vmem:[%s6] sm:$0x1]
        %v757 = vld [vmem:[%s745 + $0x1] sm:$0xff]
        %v758 = vld [vmem:[%s745 + $0x11] sm:$0xff]
        %v759 = vld [vmem:[%s745 + $0x21] sm:$0xff]
        %v760 = vld [vmem:[%s745 + $0x31] sm:$0xff]
        %v761 = vld [vmem:[%s745 + $0x41] sm:$0xff]
        %v762 = vld [vmem:[%s745 + $0x51] sm:$0xff]
        %v763 = vld [vmem:[%s745 + $0x61] sm:$0xff]
        %v764 = vld [vmem:[%s745 + $0x71] sm:$0xff]
        %v766 = vlaneseq
        %v767 = vshrl.u32 %v766, 7
        %v768 = vsub.s32 0, %v767
        %v769 = vrot.slane %v756, %v768
        %v771 = vadd.f32 %v757, %v769
        %v772 = vadd.f32 %v758, %v769
        %v773 = vadd.f32 %v759, %v769
        %v774 = vadd.f32 %v760, %v769
        %v775 = vadd.f32 %v761, %v769
        %v776 = vadd.f32 %v762, %v769
        %v777 = vadd.f32 %v763, %v769
        %v778 = vadd.f32 %v764, %v769
        %v779 = vld [vmem:[#allocation2] sm:$0xff]
        %v780 = vld [vmem:[#allocation2 + $0x10] sm:$0xff]
        %v781 = vld [vmem:[#allocation2 + $0x20] sm:$0xff]
        %v782 = vld [vmem:[#allocation2 + $0x30] sm:$0xff]
        %v783 = vld [vmem:[#allocation2 + $0x40] sm:$0xff]
        %v784 = vld [vmem:[#allocation2 + $0x50] sm:$0xff]
        %v785 = vld [vmem:[#allocation2 + $0x60] sm:$0xff]
        %v786 = vld [vmem:[#allocation2 + $0x70] sm:$0xff]
        %v787 = vlaneseq
        %v788 = vshrl.u32 %v787, 7
        %v789 = vsub.s32 0, %v788
        %v790 = vrot.slane %v754, %v789
        %v791 = vmul.f32 %v779, %v790
        %v792 = vmul.f32 %v780, %v790
        %v793 = vmul.f32 %v781, %v790
        %v794 = vmul.f32 %v782, %v790
        %v795 = vmul.f32 %v783, %v790
        %v796 = vmul.f32 %v784, %v790
        %v797 = vmul.f32 %v785, %v790
        %v798 = vmul.f32 %v786, %v790
        %v799 = vadd.f32 %v771, %v791
        %v800 = vadd.f32 %v772, %v792
        %v801 = vadd.f32 %v773, %v793
        %v802 = vadd.f32 %v774, %v794
        %v803 = vadd.f32 %v775, %v795
        %v804 = vadd.f32 %v776, %v796
        %v805 = vadd.f32 %v777, %v797
        %v806 = vadd.f32 %v778, %v798
        %v807 = vld [vmem:[#allocation2 + $0x1] sm:$0xff]
        %v808 = vld [vmem:[#allocation2 + $0x11] sm:$0xff]
        %v809 = vld [vmem:[#allocation2 + $0x21] sm:$0xff]
        %v810 = vld [vmem:[#allocation2 + $0x31] sm:$0xff]
        %v811 = vld [vmem:[#allocation2 + $0x41] sm:$0xff]
        %v812 = vld [vmem:[#allocation2 + $0x51] sm:$0xff]
        %v813 = vld [vmem:[#allocation2 + $0x61] sm:$0xff]
        %v814 = vld [vmem:[#allocation2 + $0x71] sm:$0xff]
        %v815 = vlaneseq
        %v816 = vshrl.u32 %v815, 7
        %v817 = vsub.s32 1, %v816
        %v818 = vrot.slane %v754, %v817
        %v819 = vmul.f32 %v807, %v818
        %v820 = vmul.f32 %v808, %v818
        %v821 = vmul.f32 %v809, %v818
        %v822 = vmul.f32 %v810, %v818
        %v823 = vmul.f32 %v811, %v818
        %v824 = vmul.f32 %v812, %v818
        %v825 = vmul.f32 %v813, %v818
        %v826 = vmul.f32 %v814, %v818
        %v827 = vadd.f32 %v799, %v819
        %v828 = vadd.f32 %v800, %v820
        %v829 = vadd.f32 %v801, %v821
        %v830 = vadd.f32 %v802, %v822
        %v831 = vadd.f32 %v803, %v823
        %v832 = vadd.f32 %v804, %v824
        %v833 = vadd.f32 %v805, %v825
        %v834 = vadd.f32 %v806, %v826
        %v835 = vld [vmem:[#allocation2 + $0x2] sm:$0xff]
        %v836 = vld [vmem:[#allocation2 + $0x12] sm:$0xff]
        %v837 = vld [vmem:[#allocation2 + $0x22] sm:$0xff]
        %v838 = vld [vmem:[#allocation2 + $0x32] sm:$0xff]
        %v839 = vld [vmem:[#allocation2 + $0x42] sm:$0xff]
        %v840 = vld [vmem:[#allocation2 + $0x52] sm:$0xff]
        %v841 = vld [vmem:[#allocation2 + $0x62] sm:$0xff]
        %v842 = vld [vmem:[#allocation2 + $0x72] sm:$0xff]
        %v843 = vlaneseq
        %v844 = vshrl.u32 %v843, 7
        %v845 = vsub.s32 2, %v844
        %v846 = vrot.slane %v754, %v845
        %v847 = vmul.f32 %v835, %v846
        %v848 = vmul.f32 %v836, %v846
        %v849 = vmul.f32 %v837, %v846
        %v850 = vmul.f32 %v838, %v846
        %v851 = vmul.f32 %v839, %v846
        %v852 = vmul.f32 %v840, %v846
        %v853 = vmul.f32 %v841, %v846
        %v854 = vmul.f32 %v842, %v846
        %v855 = vadd.f32 %v827, %v847
        %v856 = vadd.f32 %v828, %v848
        %v857 = vadd.f32 %v829, %v849
        %v858 = vadd.f32 %v830, %v850
        %v859 = vadd.f32 %v831, %v851
        %v860 = vadd.f32 %v832, %v852
        %v861 = vadd.f32 %v833, %v853
        %v862 = vadd.f32 %v834, %v854
        %v863 = vld [vmem:[%s745] sm:$0xff]
        %v864 = vld [vmem:[%s745 + $0x10] sm:$0xff]
        %v865 = vld [vmem:[%s745 + $0x20] sm:$0xff]
        %v866 = vld [vmem:[%s745 + $0x30] sm:$0xff]
        %v867 = vld [vmem:[%s745 + $0x40] sm:$0xff]
        %v868 = vld [vmem:[%s745 + $0x50] sm:$0xff]
        %v869 = vld [vmem:[%s745 + $0x60] sm:$0xff]
        %v870 = vld [vmem:[%s745 + $0x70] sm:$0xff]
        %v871 = vlaneseq
        %v872 = vshrl.u32 %v871, 7
        %v873 = vsub.s32 3, %v872
        %v874 = vrot.slane %v754, %v873
        %v875 = vmul.f32 %v863, %v874
        %v876 = vmul.f32 %v864, %v874
        %v877 = vmul.f32 %v865, %v874
        %v878 = vmul.f32 %v866, %v874
        %v879 = vmul.f32 %v867, %v874
        %v880 = vmul.f32 %v868, %v874
        %v881 = vmul.f32 %v869, %v874
        %v882 = vmul.f32 %v870, %v874
        %v883 = vadd.f32 %v855, %v875
        %v884 = vadd.f32 %v856, %v876
        %v885 = vadd.f32 %v857, %v877
        %v886 = vadd.f32 %v858, %v878
        %v887 = vadd.f32 %v859, %v879
        %v888 = vadd.f32 %v860, %v880
        %v889 = vadd.f32 %v861, %v881
        %v890 = vadd.f32 %v862, %v882
        %v891 = vlaneseq
        %v892 = vshrl.u32 %v891, 7
        %v893 = vsub.s32 4, %v892
        %v894 = vrot.slane %v754, %v893
        %v895 = vmul.f32 %v757, %v894
        %v896 = vmul.f32 %v758, %v894
        %v897 = vmul.f32 %v759, %v894
        %v898 = vmul.f32 %v760, %v894
        %v899 = vmul.f32 %v761, %v894
        %v900 = vmul.f32 %v762, %v894
        %v901 = vmul.f32 %v763, %v894
        %v902 = vmul.f32 %v764, %v894
        %v903 = vadd.f32 %v883, %v895
        %v904 = vadd.f32 %v884, %v896
        %v905 = vadd.f32 %v885, %v897
        %v906 = vadd.f32 %v886, %v898
        %v907 = vadd.f32 %v887, %v899
        %v908 = vadd.f32 %v888, %v900
        %v909 = vadd.f32 %v889, %v901
        %v910 = vadd.f32 %v890, %v902
        %v911 = vld [vmem:[%s745 + $0x2] sm:$0xff]
        %v912 = vld [vmem:[%s745 + $0x12] sm:$0xff]
        %v913 = vld [vmem:[%s745 + $0x22] sm:$0xff]
        %v914 = vld [vmem:[%s745 + $0x32] sm:$0xff]
        %v915 = vld [vmem:[%s745 + $0x42] sm:$0xff]
        %v916 = vld [vmem:[%s745 + $0x52] sm:$0xff]
        %v917 = vld [vmem:[%s745 + $0x62] sm:$0xff]
        %v918 = vld [vmem:[%s745 + $0x72] sm:$0xff]
        %v919 = vlaneseq
        %v920 = vshrl.u32 %v919, 7
        %v921 = vsub.s32 5, %v920
        %v922 = vrot.slane %v754, %v921
        %v923 = vmul.f32 %v911, %v922
        %v924 = vmul.f32 %v912, %v922
        %v925 = vmul.f32 %v913, %v922
        %v926 = vmul.f32 %v914, %v922
        %v927 = vmul.f32 %v915, %v922
        %v928 = vmul.f32 %v916, %v922
        %v929 = vmul.f32 %v917, %v922
        %v930 = vmul.f32 %v918, %v922
        %v931 = vadd.f32 %v903, %v923
        %v932 = vadd.f32 %v904, %v924
        %v933 = vadd.f32 %v905, %v925
        %v934 = vadd.f32 %v906, %v926
        %v935 = vadd.f32 %v907, %v927
        %v936 = vadd.f32 %v908, %v928
        %v937 = vadd.f32 %v909, %v929
        %v938 = vadd.f32 %v910, %v930
        %s939 = scalar_lea.vmem [#allocation2], 32
        %v940 = vld [vmem:[%s939] sm:$0xff]
        %v941 = vld [vmem:[%s939 + $0x10] sm:$0xff]
        %v942 = vld [vmem:[%s939 + $0x20] sm:$0xff]
        %v943 = vld [vmem:[%s939 + $0x30] sm:$0xff]
        %v944 = vld [vmem:[%s939 + $0x40] sm:$0xff]
        %v945 = vld [vmem:[%s939 + $0x50] sm:$0xff]
        %v946 = vld [vmem:[%s939 + $0x60] sm:$0xff]
        %v947 = vld [vmem:[%s939 + $0x70] sm:$0xff]
        %v948 = vlaneseq
        %v949 = vshrl.u32 %v948, 7
        %v950 = vsub.s32 6, %v949
        %v951 = vrot.slane %v754, %v950
        %v952 = vmul.f32 %v940, %v951
        %v953 = vmul.f32 %v941, %v951
        %v954 = vmul.f32 %v942, %v951
        %v955 = vmul.f32 %v943, %v951
        %v956 = vmul.f32 %v944, %v951
        %v957 = vmul.f32 %v945, %v951
        %v958 = vmul.f32 %v946, %v951
        %v959 = vmul.f32 %v947, %v951
        %v960 = vadd.f32 %v931, %v952
        %v961 = vadd.f32 %v932, %v953
        %v962 = vadd.f32 %v933, %v954
        %v963 = vadd.f32 %v934, %v955
        %v964 = vadd.f32 %v935, %v956
        %v965 = vadd.f32 %v936, %v957
        %v966 = vadd.f32 %v937, %v958
        %v967 = vadd.f32 %v938, %v959
        %v968 = vld [vmem:[%s939 + $0x1] sm:$0xff]
        %v969 = vld [vmem:[%s939 + $0x11] sm:$0xff]
        %v970 = vld [vmem:[%s939 + $0x21] sm:$0xff]
        %v971 = vld [vmem:[%s939 + $0x31] sm:$0xff]
        %v972 = vld [vmem:[%s939 + $0x41] sm:$0xff]
        %v973 = vld [vmem:[%s939 + $0x51] sm:$0xff]
        %v974 = vld [vmem:[%s939 + $0x61] sm:$0xff]
        %v975 = vld [vmem:[%s939 + $0x71] sm:$0xff]
        %v976 = vlaneseq
        %v977 = vshrl.u32 %v976, 7
        %v978 = vsub.s32 7, %v977
        %v979 = vrot.slane %v754, %v978
        %v980 = vmul.f32 %v968, %v979
        %v981 = vmul.f32 %v969, %v979
        %v982 = vmul.f32 %v970, %v979
        %v983 = vmul.f32 %v971, %v979
        %v984 = vmul.f32 %v972, %v979
        %v985 = vmul.f32 %v973, %v979
        %v986 = vmul.f32 %v974, %v979
        %v987 = vmul.f32 %v975, %v979
        %v988 = vadd.f32 %v960, %v980
        %v989 = vadd.f32 %v961, %v981
        %v990 = vadd.f32 %v962, %v982
        %v991 = vadd.f32 %v963, %v983
        %v992 = vadd.f32 %v964, %v984
        %v993 = vadd.f32 %v965, %v985
        %v994 = vadd.f32 %v966, %v986
        %v995 = vadd.f32 %v967, %v987
        %v996 = vld [vmem:[%s939 + $0x2] sm:$0xff]
        %v997 = vld [vmem:[%s939 + $0x12] sm:$0xff]
        %v998 = vld [vmem:[%s939 + $0x22] sm:$0xff]
        %v999 = vld [vmem:[%s939 + $0x32] sm:$0xff]
        %v1000 = vld [vmem:[%s939 + $0x42] sm:$0xff]
        %v1001 = vld [vmem:[%s939 + $0x52] sm:$0xff]
        %v1002 = vld [vmem:[%s939 + $0x62] sm:$0xff]
        %v1003 = vld [vmem:[%s939 + $0x72] sm:$0xff]
        %v1004 = vlaneseq
        %v1005 = vshrl.u32 %v1004, 7
        %v1006 = vsub.s32 0, %v1005
        %v1007 = vrot.slane %v755, %v1006
        %v1008 = vmul.f32 %v996, %v1007
        %v1009 = vmul.f32 %v997, %v1007
        %v1010 = vmul.f32 %v998, %v1007
        %v1011 = vmul.f32 %v999, %v1007
        %v1012 = vmul.f32 %v1000, %v1007
        %v1013 = vmul.f32 %v1001, %v1007
        %v1014 = vmul.f32 %v1002, %v1007
        %v1015 = vmul.f32 %v1003, %v1007
        %v1016 = vadd.f32 %v988, %v1008
        %v1017 = vadd.f32 %v989, %v1009
        %v1018 = vadd.f32 %v990, %v1010
        %v1019 = vadd.f32 %v991, %v1011
        %v1020 = vadd.f32 %v992, %v1012
        %v1021 = vadd.f32 %v993, %v1013
        %v1022 = vadd.f32 %v994, %v1014
        %v1023 = vadd.f32 %v995, %v1015
        %v1024 = vmul.f32 %v1016, 0.5
        %v1025 = vmul.f32 %v1017, 0.5
        %v1026 = vmul.f32 %v1018, 0.5
        %v1027 = vmul.f32 %v1019, 0.5
        %v1028 = vmul.f32 %v1020, 0.5
        %v1029 = vmul.f32 %v1021, 0.5
        %v1030 = vmul.f32 %v1022, 0.5
        %v1031 = vmul.f32 %v1023, 0.5
        %v1032 = vmul.f32 %v1016, 0.70710677
        %v1033 = vmul.f32 %v1017, 0.70710677
        %v1034 = vmul.f32 %v1018, 0.70710677
        %v1035 = vmul.f32 %v1019, 0.70710677
        %v1036 = vmul.f32 %v1020, 0.70710677
        %v1037 = vmul.f32 %v1021, 0.70710677
        %v1038 = vmul.f32 %v1022, 0.70710677
        %v1039 = vmul.f32 %v1023, 0.70710677
        %v1040 = verf.f32.pop %v1032
        %v1041 = verf.f32.pop %v1033
        %v1042 = verf.f32.pop %v1034
        %v1043 = verf.f32.pop %v1035
        %v1044 = verf.f32.pop %v1036
        %v1045 = verf.f32.pop %v1037
        %v1046 = verf.f32.pop %v1038
        %v1047 = verf.f32.pop %v1039
        %v1048 = vadd.f32 %v1040, 1.0
        %v1049 = vadd.f32 %v1041, 1.0
        %v1050 = vadd.f32 %v1042, 1.0
        %v1051 = vadd.f32 %v1043, 1.0
        %v1052 = vadd.f32 %v1044, 1.0
        %v1053 = vadd.f32 %v1045, 1.0
        %v1054 = vadd.f32 %v1046, 1.0
        %v1055 = vadd.f32 %v1047, 1.0
        %v1056 = vmul.f32 %v1024, %v1048
        %v1057 = vmul.f32 %v1025, %v1049
        %v1058 = vmul.f32 %v1026, %v1050
        %v1059 = vmul.f32 %v1027, %v1051
        %v1060 = vmul.f32 %v1028, %v1052
        %v1061 = vmul.f32 %v1029, %v1053
        %v1062 = vmul.f32 %v1030, %v1054
        %v1063 = vmul.f32 %v1031, %v1055
        %v1064 = vld [vmem:[%s7] sm:$0xf]
        %v1065 = vld [vmem:[%s7 + $0x4] sm:$0xf]
        %v1066 = vld [vmem:[%s7 + $0x8] sm:$0xf]
        %v1067 = vld [vmem:[%s7 + $0xc] sm:$0xf]
        %v1068 = vld [vmem:[%s7 + $0x10] sm:$0xf]
        %v1069 = vld [vmem:[%s7 + $0x14] sm:$0xf]
        %v1070 = vld [vmem:[%s7 + $0x18] sm:$0xf]
        %v1071 = vld [vmem:[%s7 + $0x1c] sm:$0xf]
        %v1072 = vld [vmem:[%s8] sm:$0x1]
        %v1073 = vpack.c.bf16 %v1057, %v1056
        %v1074 = vpack.c.bf16 %v1059, %v1058
        %v1075 = vpack.c.bf16 %v1061, %v1060
        %v1076 = vpack.c.bf16 %v1063, %v1062
        %v1078 = vlaneseq
        %v1079 = vshrl.u32 %v1078, 7
        %v1080 = vsub.s32 0, %v1079
        %v1081 = vrot.slane %v1072, %v1080
        %v1091 = vunpack.c.l.b16 %v1064
        %v1092 = vunpack.c.l.b16 %v1065
        %v1093 = vunpack.c.l.b16 %v1066
        %v1094 = vunpack.c.l.b16 %v1067
        %v1095 = vunpack.c.l.b16 %v1068
        %v1096 = vunpack.c.l.b16 %v1069
        %v1097 = vunpack.c.l.b16 %v1070
        %v1098 = vunpack.c.l.b16 %v1071
        %v1099 = vpack.c.b16 %v1092, %v1091
        %v1100 = vpack.c.b16 %v1094, %v1093
        %v1101 = vpack.c.b16 %v1096, %v1095
        %v1102 = vpack.c.b16 %v1098, %v1097
        %v1108 = vsel %vm741, %v1073, 0
        %v1111 = vsel %vm741, %v1074, 0
        %v1114 = vsel %vm741, %v1075, 0
        %v1117 = vsel %vm741, %v1076, 0
        %1119 = vmatprep.subr.bf16.mxu0 0
        %1120 = vmatpush1.bf16.msra.mxu0 0
        %1121 = vmatprep.subr.bf16.mxu0 0
        %1122 = vmatpush1.bf16.msra.mxu0 0
        %1123 = vmatprep.subr.bf16.mxu0 0
        %1124 = vmatpush1.bf16.msra.mxu0 0
        %1125 = vmatprep.subr.bf16.mxu0 0
        %1126 = vmatpush1.bf16.msra.mxu0 0
        %1127 = vmatprep.subr.bf16.mxu0 0
        %1128 = vmatpush1.bf16.msra.mxu0 %v1102
        %1129 = vmatprep.subr.bf16.mxu0 0
        %1130 = vmatpush1.bf16.msra.mxu0 %v1101
        %1131 = vmatprep.subr.bf16.mxu0 0
        %1132 = vmatpush1.bf16.msra.mxu0 %v1100
        %1133 = vmatprep.subr.bf16.mxu0 0
        %1134 = vmatpush1.bf16.msra.mxu0 %v1099
        %1135 = vmatprep.subr.bf16.mxu0 0
        %1136 = vmatpush2.bf16.msra.mxu0 0
        %1137 = vmatprep.subr.bf16.mxu0 0
        %1138 = vmatpush2.bf16.msra.mxu0 0
        %1139 = vmatprep.subr.bf16.mxu0 0
        %1140 = vmatpush2.bf16.msra.mxu0 0
        %1141 = vmatprep.subr.bf16.mxu0 0
        %1142 = vmatpush2.bf16.msra.mxu0 0
        %1143 = vmatprep.subr.bf16.mxu0 0
        %1144 = vmatpush2.bf16.msra.mxu0 0
        %1145 = vmatprep.subr.bf16.mxu0 0
        %1146 = vmatpush2.bf16.msra.mxu0 0
        %1147 = vmatprep.subr.bf16.mxu0 0
        %1148 = vmatpush2.bf16.msra.mxu0 0
        %1149 = vmatprep.subr.bf16.mxu0 0
        %1150 = vmatpush2.bf16.msra.mxu0 0
        %1151 = vmatprep.mubr.bf16.mxu0 0
        %1152 = vmatmul.mubr.bf16.gmra.mxu0 %v1108
        %v1153 = vpop.f32.mrf.mxu0
        %v1154 = vadd.f32 %v1081, %v1153
        %v1155 = vpop.f32.mrf.mxu0
        %v1156 = vpop.f32.mrf.mxu0
        %v1157 = vadd.f32 %v1081, %v1156
        %v1158 = vpop.f32.mrf.mxu0
        %1159 = vmatprep.mubr.bf16.mxu0 0
        %1160 = vmatmul.mubr.bf16.gmra.mxu0 %v1111
        %v1161 = vpop.f32.mrf.mxu0
        %v1162 = vadd.f32 %v1081, %v1161
        %v1163 = vpop.f32.mrf.mxu0
        %v1164 = vpop.f32.mrf.mxu0
        %v1165 = vadd.f32 %v1081, %v1164
        %v1166 = vpop.f32.mrf.mxu0
        %1167 = vmatprep.mubr.bf16.mxu0 0
        %1168 = vmatmul.mubr.bf16.gmra.mxu0 %v1114
        %v1169 = vpop.f32.mrf.mxu0
        %v1170 = vadd.f32 %v1081, %v1169
        %v1171 = vpop.f32.mrf.mxu0
        %v1172 = vpop.f32.mrf.mxu0
        %v1173 = vadd.f32 %v1081, %v1172
        %v1174 = vpop.f32.mrf.mxu0
        %1175 = vmatprep.mubr.bf16.mxu0 0
        %1176 = vmatmul.mubr.bf16.gmra.mxu0 %v1117
        %v1177 = vpop.f32.mrf.mxu0
        %v1178 = vadd.f32 %v1081, %v1177
        %v1179 = vpop.f32.mrf.mxu0
        %v1180 = vpop.f32.mrf.mxu0
        %v1181 = vadd.f32 %v1081, %v1180
        %v1182 = vpop.f32.mrf.mxu0
        %1183 = vdwg.mxu0
        %1184 = vst.msk [vmem:[%s471] sm:$0xff] %vm542, %v1154
        %1185 = vst.msk [vmem:[%s471 + $0x8] sm:$0xff] %vm542, %v1157
        %1186 = vst.msk [vmem:[%s471 + $0x10] sm:$0xff] %vm542, %v1162
        %1187 = vst.msk [vmem:[%s471 + $0x18] sm:$0xff] %vm542, %v1165
        %1188 = vst.msk [vmem:[%s471 + $0x20] sm:$0xff] %vm542, %v1170
        %1189 = vst.msk [vmem:[%s471 + $0x28] sm:$0xff] %vm542, %v1173
        %1190 = vst.msk [vmem:[%s471 + $0x30] sm:$0xff] %vm542, %v1178
        %1191 = vst.msk [vmem:[%s471 + $0x38] sm:$0xff] %vm542, %v1181
        %s1192 = sand.u32 %s277, 1
        %s1193 = scalar_lea.sflag [#allocation5], %s1192
        %s1194 = sand.u32 %s277, 1
        %s1195 = smul.addr %s1194, 64
        %s1196 = scalar_lea.vmem [#allocation9], %s1195
        // Predicated region
        $region69: #{tpu_custom_call.1} parent=55 // pred_check
          %p1197 = pneg %p287
        $region70: #{tpu_custom_call.1} parent=55 // pred_check_branch
          %1199 = sbr.rel (%p1197) target = $region72
        $region71: #{tpu_custom_call.1} parent=55 // pred_region
          %s1200 = smul.u32 8, %s34
          %s1202 = ssub.s32 1024, 1024
          %1203 = vsyncadd %s1193, %s1202
          %s1204 = smul.addr %s33, 8
          %s1205 = sadd.s32 %s1200, %s1204
          %s1206 = smul.addr %s1205, 128
          %s1207 = scalar_lea.hbm %s9, %s1206
          %s1208 = sshll.u32 %s1196, 4
          %s1209 = int_to_ptr.vmem [resolvable:$true] %s1208
          %1214 = dma.vmem_to_hbm [thread:$0]  %s1209, 1024, %s1207, %s1193, 128, 128, 8
        $region72: #{tpu_custom_call.1} parent=55 // pred_fallthru
          _
      $region56: #{tpu_custom_call.1} parent=5 // pred_fallthru
        _
      %p1215 = scmp.le.s32.totalorder 2, %s24
      // Predicated region
      $region73: #{tpu_custom_call.1} parent=5 // pred_check
        %p1216 = pneg %p1215
      $region74: #{tpu_custom_call.1} parent=5 // pred_check_branch
        %1218 = sbr.rel (%p1216) target = $region76
      $region75: #{tpu_custom_call.1} parent=5 // pred_region
        %s1219 = ssub.s32 %s24, 2
        // Predicated region
        $region77: #{tpu_custom_call.1} parent=75 // pred_check
          %p1220 = pneg %p293
        $region78: #{tpu_custom_call.1} parent=75 // pred_check_branch
          %1222 = sbr.rel (%p1220) target = $region80
        $region79: #{tpu_custom_call.1} parent=75 // pred_region
          %s1223 = sand.u32 %s278, 1
          %s1224 = scalar_lea.sflag [#allocation5], %s1223
          %s1225 = sand.u32 %s278, 1
          %s1226 = smul.addr %s1225, 64
          %s1227 = scalar_lea.vmem [#allocation9], %s1226
          %1228 = dma.done %s1224, 1024
        $region80: #{tpu_custom_call.1} parent=75 // pred_fallthru
          _
      $region76: #{tpu_custom_call.1} parent=5 // pred_fallthru
        _
    $region6: #{tpu_custom_call.1} parent=1 // loop_footer
      %s28 = sadd.s32 1, %s24
    $region7: #{tpu_custom_call.1} parent=1 // loop_footer_branch
      %23 = sbr.rel target = $region3
    $region8: #{tpu_custom_call.1} parent=1 // loop_exit
      _
    %1229 = vsyncpa [#allocation4], 1
    %s1230 = scalar_lea.sflag [#allocation4], 1
    %1231 = vsyncpa %s1230, 1
    %1232 = vsyncpa [#allocation7], 1
    %s1233 = scalar_lea.sflag [#allocation7], 1
    %1234 = vsyncpa %s1233, 1
    %1235 = vsyncpa [#allocation5], 1
    %s1236 = scalar_lea.sflag [#allocation5], 1
    %1237 = vsyncpa %s1236, 1

</llo_original>
